<compile_context>
chip_gen: v6e
topology: v6e:2x2x1
jax: 0.10.0
libtpu: 0.0.40
codegen_flags: <defaults>
</compile_context>

<pallas_src>
import functools

import jax
import jax.numpy as jnp
from jax.experimental import pallas as pl
from jax.experimental.pallas import tpu as pltpu


# ----------------------------------------------------------------------------
# Kernel
# ----------------------------------------------------------------------------
def _gelu(x, approximate):
    if approximate:
        # tanh-approx: transcendental lands on the (otherwise idle) EUP slot.
        # Small numerical deviation from torch's exact nn.GELU().
        return jax.nn.gelu(x, approximate=True)
    # nn.GELU() default: exact erf-based GELU.
    return 0.5 * x * (1.0 + jax.lax.erf(x * 0.7071067811865476))


def _mlp_kernel(x_ref, w1_ref, b1_ref, w2_ref, b2_ref, o_ref, acc_ref, *,
                approximate):
    k = pl.program_id(1)

    @pl.when(k == 0)
    def _init():
        acc_ref[...] = jnp.zeros_like(acc_ref)

    x = x_ref[...]
    # fc1: operands stay in the input dtype (bf16-native MXU on v6e/v7x);
    # accumulation, bias and GELU in f32.
    h = jnp.dot(x, w1_ref[...], preferred_element_type=jnp.float32)
    h = h + b1_ref[...].astype(jnp.float32)
    h = _gelu(h, approximate)
    # fc2: cast activations back to the input dtype for the MXU, accumulate f32.
    acc_ref[...] += jnp.dot(h.astype(x.dtype), w2_ref[...],
                            preferred_element_type=jnp.float32)

    @pl.when(k == pl.num_programs(1) - 1)
    def _finalize():
        o_ref[...] = (acc_ref[...] + b2_ref[...].astype(jnp.float32)
                      ).astype(o_ref.dtype)


# ----------------------------------------------------------------------------
# Tile / VMEM selection
# ----------------------------------------------------------------------------
def _vmem_budget_bytes():
    """~75% of this generation's physical VMEM (v5e/v6e 128 MiB, v7x 64 MiB)."""
    try:
        cap = int(pltpu.get_tpu_info().vmem_capacity_bytes)
    except Exception:
        cap = 64 << 20  # conservative default (v7x)
    return (cap * 3) // 4


def _pick_blocks(M, C, Hd, out_C, itemsize, budget):
    """Pick (row_tile, hidden_tile, per_step_bytes).

    Row tiles are capped at 1024 (HBM roofline saturates well before that) and
    sized so the row grid has >= ~4 steps (megacore sharding + DMA/compute
    overlap). Hidden tiles keep the f32 intermediates inside the VMEM budget.
    """
    max_rows = min(1024, max(8, ((M // 4) // 8) * 8))
    row_cands = [r for r in (1024, 512, 256, 128, 64, 32, 16, 8)
                 if r <= max_rows] or [8]
    h_cands = [Hd] + [h for h in (2048, 1024, 512, 256, 128) if h < Hd]

    def step_bytes(rows, hc):
        return (2 * rows * C * itemsize                 # input tile (x2 buffers)
                + 2 * rows * out_C * itemsize           # output tile (x2 buffers)
                + 2 * (C * hc + hc) * itemsize          # w1/b1 chunk (x2 buffers)
                + 2 * (hc * out_C + out_C) * itemsize   # w2/b2 chunk (x2 buffers)
                + rows * out_C * 4                      # f32 accumulator scratch
                + rows * hc * 4                         # f32 hidden intermediate
                + rows * hc * itemsize)                 # hidden cast to input dtype

    for rows in row_cands:
        for hc in h_cands:
            b = step_bytes(rows, hc)
            if b <= budget:
                return rows, hc, b
    return 8, min(Hd, 128), step_bytes(8, min(Hd, 128))


# ----------------------------------------------------------------------------
# Wrapper
# ----------------------------------------------------------------------------
def mlp_forward(x, w1, b1, w2, b2, *, approximate_gelu=False):
    """Pallas Mlp.forward: fc2(GELU(fc1(x))); Dropout(p=0.0) is the identity.

    Weight layout: w1 is (in_features, hidden), w2 is (hidden, out_features),
    i.e. already transposed relative to torch.nn.Linear.weight.
    """
    orig_shape = x.shape
    C = orig_shape[-1]
    Hd = w1.shape[1]
    out_C = w2.shape[1]

    x2d = x.reshape(-1, C)
    M = x2d.shape[0]
    itemsize = jnp.dtype(x.dtype).itemsize

    budget = _vmem_budget_bytes()
    rows, hc, step_bytes = _pick_blocks(M, C, Hd, out_C, itemsize, budget)

    # Hidden-dim tiling: zero-pad Hd to a multiple of the hidden chunk.  Zero
    # columns of W1/b1 give GELU(0) = 0 and zero rows of W2 contribute nothing,
    # so the padding is exact (no masking needed on the contraction axis).
    n_h = -(-Hd // hc)
    Hp = n_h * hc
    if Hp != Hd:
        w1 = jnp.pad(w1, ((0, 0), (0, Hp - Hd)))
        b1 = jnp.pad(b1, ((0, Hp - Hd),))
        w2 = jnp.pad(w2, ((0, Hp - Hd), (0, 0)))

    b1_2d = b1.reshape(1, Hp)
    b2_2d = b2.reshape(1, out_C)

    # Pad-free row axis: cdiv grid; Pallas masks the partial last block (rows
    # are independent in both matmuls, so garbage rows never contaminate real
    # ones, and their stores are masked).
    grid = (pl.cdiv(M, rows), n_h)

    vmem_limit = int(min(budget, max(step_bytes + (8 << 20), 32 << 20)))

    kernel = functools.partial(_mlp_kernel, approximate=approximate_gelu)

    out2d = pl.pallas_call(
        kernel,
        out_shape=jax.ShapeDtypeStruct((M, out_C), x.dtype),
        grid=grid,
        in_specs=[
            pl.BlockSpec((rows, C), lambda i, k: (i, 0)),
            pl.BlockSpec((C, hc), lambda i, k: (0, k)),
            pl.BlockSpec((1, hc), lambda i, k: (0, k)),
            pl.BlockSpec((hc, out_C), lambda i, k: (k, 0)),
            pl.BlockSpec((1, out_C), lambda i, k: (0, 0)),
            # TODO(synk): when n_h == 1 the weight/bias blocks are grid-invariant;
            # pipeline_mode=pl.Buffered(1) on them would halve their VMEM cost.
        ],
        out_specs=pl.BlockSpec((rows, out_C), lambda i, k: (i, 0)),
        scratch_shapes=[pltpu.VMEM((rows, out_C), jnp.float32)],
        compiler_params=pltpu.CompilerParams(
            dimension_semantics=("parallel", "arbitrary"),
            vmem_limit_bytes=vmem_limit,
        ),
    )(x2d, w1, b1_2d, w2, b2_2d)

    return out2d.reshape(*orig_shape[:-1], out_C)


# Pure-JAX reference (matches PyTorch Mlp with drop=0.0)
def mlp_reference(x, w1, b1, w2, b2):
    h = jnp.dot(x, w1, precision=jax.lax.Precision.HIGHEST) + b1
    h = 0.5 * h * (1.0 + jax.lax.erf(h / jnp.sqrt(2.0)))
    return jnp.dot(h, w2, precision=jax.lax.Precision.HIGHEST) + b2


# ----------------------------------------------------------------------------
# Demo
# ----------------------------------------------------------------------------
if __name__ == "__main__":
    # Small but lane-dense shapes: (B, N, C) tokens with C=128, hidden=256.
    B, N, C = 2, 512, 128
    hidden = 2 * C          # mlp_ratio = 2 for the demo
    out_C = C               # out_features = in_features (module default)

    key = jax.random.PRNGKey(0)
    kx, k1, k2, k3, k4 = jax.random.split(key, 5)

    def init(k, shape, std=0.02):
        return (jax.random.normal(k, shape, jnp.float32) * std).astype(jnp.float32)

    x = jax.random.normal(kx, (B, N, C), jnp.float32)
    w1 = init(k1, (C, hidden))
    b1 = init(k2, (hidden,))
    w2 = init(k3, (hidden, out_C))
    b2 = init(k4, (out_C,))

    out = mlp_forward(x, w1, b1, w2, b2)
    jax.block_until_ready(out)

    ref = mlp_reference(x, w1, b1, w2, b2)
    assert out.shape == (B, N, out_C) and out.dtype == jnp.float32
    assert jnp.allclose(out, ref, atol=1e-3, rtol=1e-3), float(
        jnp.max(jnp.abs(out - ref)))

    # TODO(synk): stochastic dropout (drop > 0.0, training mode) is not
    # implemented; the reference module uses drop=0.0 (identity) in eval.
    print("KERNEL_OK")
</pallas_src>

<mosaic_0001>
module attributes {stable_mosaic.version = 11 : i64} {
  func.func @_mlp_kernel(%arg0: i32, %arg1: i32, %arg2: memref<256x128xf32, #tpu.memory_space<vmem>>, %arg3: memref<128x256xf32, #tpu.memory_space<vmem>>, %arg4: memref<1x256xf32, #tpu.memory_space<vmem>>, %arg5: memref<256x128xf32, #tpu.memory_space<vmem>>, %arg6: memref<1x128xf32, #tpu.memory_space<vmem>>, %arg7: memref<256x128xf32, #tpu.memory_space<vmem>>, %arg8: memref<256x128xf32, #tpu.memory_space<vmem>>) attributes {dimension_semantics = [#tpu.dimension_semantics<parallel>, #tpu.dimension_semantics<arbitrary>], iteration_bounds = array<i64: 4, 1>, scalar_prefetch = 0 : i64, scratch_operands = 1 : i64, tpu.core_type = #tpu.core_type<tc>, window_params = [{transform_indices = @transform_0, window_bounds = array<i64: 256, 128>}, {transform_indices = @transform_1, window_bounds = array<i64: 128, 256>}, {transform_indices = @transform_2, window_bounds = array<i64: 1, 256>}, {transform_indices = @transform_3, window_bounds = array<i64: 256, 128>}, {pipeline_mode = #tpu.pipeline_mode<synchronous>, transform_indices = @transform_4, window_bounds = array<i64: 1, 128>}, {transform_indices = @transform_5, window_bounds = array<i64: 256, 128>}]} {
    %c0_i32 = arith.constant 0 : i32
    %0 = arith.cmpi eq, %arg1, %c0_i32 : i32
    %1 = arith.extui %0 : i1 to i32
    %c0_i32_0 = arith.constant 0 : i32
    %2 = arith.cmpi ne, %1, %c0_i32_0 : i32
    scf.if %2 {
      %cst_18 = arith.constant 0.000000e+00 : f32
      %25 = vector.broadcast %cst_18 : f32 to vector<256x128xf32>
      %c0_19 = arith.constant 0 : index
      %c0_20 = arith.constant 0 : index
      %26 = vector.load %arg8[%c0_19, %c0_20] : memref<256x128xf32, #tpu.memory_space<vmem>>, vector<256x128xf32>
      tpu.vector_store %arg8[%c0_19, %c0_20], %25 {strides = array<i32>} : memref<256x128xf32, #tpu.memory_space<vmem>>, vector<256x128xf32>,
    } else {
    }
    %c0 = arith.constant 0 : index
    %c0_1 = arith.constant 0 : index
    %3 = vector.load %arg2[%c0, %c0_1] : memref<256x128xf32, #tpu.memory_space<vmem>>, vector<256x128xf32>
    %c0_2 = arith.constant 0 : index
    %c0_3 = arith.constant 0 : index
    %4 = vector.load %arg3[%c0_2, %c0_3] : memref<128x256xf32, #tpu.memory_space<vmem>>, vector<128x256xf32>
    %cst = arith.constant dense<0.000000e+00> : vector<256x256xf32>
    %5 = tpu.matmul %3, %4, %cst {dimension_numbers = #tpu.dot_dimension_numbers<[1], [0], [0], [1], [0, 0, 1, 1], [], []>} : vector<256x128xf32>, vector<128x256xf32>, vector<256x256xf32> -> vector<256x256xf32>
    %c0_4 = arith.constant 0 : index
    %c0_5 = arith.constant 0 : index
    %6 = vector.load %arg4[%c0_4, %c0_5] : memref<1x256xf32, #tpu.memory_space<vmem>>, vector<1x256xf32>
    %7 = vector.broadcast %6 : vector<1x256xf32> to vector<256x256xf32>
    %8 = arith.addf %5, %7 : vector<256x256xf32>
    %cst_6 = arith.constant 5.000000e-01 : f32
    %9 = vector.broadcast %cst_6 : f32 to vector<256x256xf32>
    %10 = arith.mulf %9, %8 : vector<256x256xf32>
    %cst_7 = arith.constant 0.707106769 : f32
    %11 = vector.broadcast %cst_7 : f32 to vector<256x256xf32>
    %12 = arith.mulf %8, %11 : vector<256x256xf32>
    %13 = math.erf %12 : vector<256x256xf32>
    %cst_8 = arith.constant 1.000000e+00 : f32
    %14 = vector.broadcast %cst_8 : f32 to vector<256x256xf32>
    %15 = arith.addf %14, %13 : vector<256x256xf32>
    %16 = arith.mulf %10, %15 : vector<256x256xf32>
    %c0_9 = arith.constant 0 : index
    %c0_10 = arith.constant 0 : index
    %17 = vector.load %arg8[%c0_9, %c0_10] : memref<256x128xf32, #tpu.memory_space<vmem>>, vector<256x128xf32>
    %c0_11 = arith.constant 0 : index
    %c0_12 = arith.constant 0 : index
    %18 = vector.load %arg5[%c0_11, %c0_12] : memref<256x128xf32, #tpu.memory_space<vmem>>, vector<256x128xf32>
    %cst_13 = arith.constant dense<0.000000e+00> : vector<256x128xf32>
    %19 = tpu.matmul %16, %18, %cst_13 {dimension_numbers = #tpu.dot_dimension_numbers<[1], [0], [0], [1], [0, 0, 1, 1], [], []>} : vector<256x256xf32>, vector<256x128xf32>, vector<256x128xf32> -> vector<256x128xf32>
    %20 = arith.addf %17, %19 : vector<256x128xf32>
    %c0_14 = arith.constant 0 : index
    %c0_15 = arith.constant 0 : index
    %21 = vector.load %arg8[%c0_14, %c0_15] : memref<256x128xf32, #tpu.memory_space<vmem>>, vector<256x128xf32>
    tpu.vector_store %arg8[%c0_14, %c0_15], %20 {strides = array<i32>} : memref<256x128xf32, #tpu.memory_space<vmem>>, vector<256x128xf32>,
    %c0_i32_16 = arith.constant 0 : i32
    %22 = arith.cmpi eq, %arg1, %c0_i32_16 : i32
    %23 = arith.extui %22 : i1 to i32
    %c0_i32_17 = arith.constant 0 : i32
    %24 = arith.cmpi ne, %23, %c0_i32_17 : i32
    scf.if %24 {
      %c0_18 = arith.constant 0 : index
      %c0_19 = arith.constant 0 : index
      %25 = vector.load %arg8[%c0_18, %c0_19] : memref<256x128xf32, #tpu.memory_space<vmem>>, vector<256x128xf32>
      %c0_20 = arith.constant 0 : index
      %c0_21 = arith.constant 0 : index
      %26 = vector.load %arg6[%c0_20, %c0_21] : memref<1x128xf32, #tpu.memory_space<vmem>>, vector<1x128xf32>
      %27 = vector.broadcast %26 : vector<1x128xf32> to vector<256x128xf32>
      %28 = arith.addf %25, %27 : vector<256x128xf32>
      %c0_22 = arith.constant 0 : index
      %c0_23 = arith.constant 0 : index
      %29 = vector.load %arg7[%c0_22, %c0_23] : memref<256x128xf32, #tpu.memory_space<vmem>>, vector<256x128xf32>
      tpu.vector_store %arg7[%c0_22, %c0_23], %28 {strides = array<i32>} : memref<256x128xf32, #tpu.memory_space<vmem>>, vector<256x128xf32>,
    } else {
    }
    return
  }
  func.func @transform_0(%arg0: i32, %arg1: i32) -> (i32, i32) {
    %c0_i32 = arith.constant 0 : i32
    %c0_i32_0 = arith.constant 0 : i32
    return %arg0, %c0_i32 : i32, i32
  }
  func.func @transform_1(%arg0: i32, %arg1: i32) -> (i32, i32) {
    %c0_i32 = arith.constant 0 : i32
    %c0_i32_0 = arith.constant 0 : i32
    return %c0_i32, %arg1 : i32, i32
  }
  func.func @transform_2(%arg0: i32, %arg1: i32) -> (i32, i32) {
    %c0_i32 = arith.constant 0 : i32
    %c0_i32_0 = arith.constant 0 : i32
    return %c0_i32, %arg1 : i32, i32
  }
  func.func @transform_3(%arg0: i32, %arg1: i32) -> (i32, i32) {
    %c0_i32 = arith.constant 0 : i32
    %c0_i32_0 = arith.constant 0 : i32
    return %arg1, %c0_i32 : i32, i32
  }
  func.func @transform_4(%arg0: i32, %arg1: i32) -> (i32, i32) {
    %c0_i32 = arith.constant 0 : i32
    %c0_i32_0 = arith.constant 0 : i32
    %c0_i32_1 = arith.constant 0 : i32
    return %c0_i32, %c0_i32_0 : i32, i32
  }
  func.func @transform_5(%arg0: i32, %arg1: i32) -> (i32, i32) {
    %c0_i32 = arith.constant 0 : i32
    %c0_i32_0 = arith.constant 0 : i32
    return %arg0, %c0_i32 : i32, i32
  }
}

</mosaic_0001>

<llo_original>
// kernel: tpu_custom_call.1
$region0: #{tpu_custom_call.1}
  #allocation0 [shape = 'u32[]', space=smem, size = 0x4, offset = 0x4, fixed_abs, tag = 'smem constant byte address 0x4 - core index']
  #allocation1 [shape = 'u32[144,128]{1,0:T(1,128)}', space=vmem, size = 0x12000, scoped, tag = 'internal scratch']
  #allocation2 [shape = 'f32[256,128]{1,0:T(8,128)}', space=vmem, size = 0x20000, scoped, tag = 'scratch operand']
  %s0 = inlined_call_operand.hbm [shape: f32[1024,128], index: 0, kind: input, shape index: {}]
  %s1 = inlined_call_operand.hbm [shape: f32[128,256], index: 1, kind: input, shape index: {}]
  %s2 = inlined_call_operand.vmem [shape: f32[1,256], index: 2, kind: input, shape index: {}]
  %s3 = inlined_call_operand.hbm [shape: f32[256,128], index: 3, kind: input, shape index: {}]
  %s4 = inlined_call_operand.vmem [shape: f32[1,128], index: 4, kind: input, shape index: {}]
  %s5 = inlined_call_operand.hbm [shape: f32[1024,128], index: 5, kind: output, shape index: {}]
  %s6 = sld [smem:[#allocation0]]
  $region73: #{tpu_custom_call.1} parent=0
    _
  %s8 = ssub.s32 1, %s6
  %s9 = scalar_select 0, %s8, %s6
  $region1: #{tpu_custom_call.1} parent=0
    #allocation3 [shape = 'u8[262144]{0}', space=vmem, size = 0x40000, scoped, tag = 'input window, operand 0']
    #allocation4 [shape = 's32[2]{0}', space=sflag, size = 0x8, scoped, tag = 'scoped memory for tpu_custom_call.1']
    #allocation5 [shape = 's32[2]{0}', space=sflag, size = 0x8, scoped, tag = 'scoped memory for tpu_custom_call.1']
    #allocation6 [shape = 'u8[131072]{0}', space=vmem, size = 0x20000, scoped, tag = 'input window, operand 1, single buffered']
    #allocation7 [shape = 's32[1]{0}', space=sflag, size = 0x4, scoped, tag = 'scoped memory for tpu_custom_call.1']
    #allocation8 [shape = 'u8[131072]{0}', space=vmem, size = 0x20000, scoped, tag = 'input window, operand 3, single buffered']
    #allocation9 [shape = 'u8[262144]{0}', space=vmem, size = 0x40000, scoped, tag = 'output window, operand 0']
    %10 = vsyncpa [#allocation4], 0
    %s11 = scalar_lea.sflag [#allocation4], 1
    %12 = vsyncpa %s11, 0
    %13 = vsyncpa [#allocation7], 0
    %14 = vsyncpa [#allocation5], 0
    %s15 = scalar_lea.sflag [#allocation5], 1
    %16 = vsyncpa %s15, 0
    loop: start=0, step=1, limit=6
    $region2: #{tpu_custom_call.1} parent=1 // loop_pre_header
      _
    $region3: #{tpu_custom_call.1} parent=1 // loop_header
      %s18 = sphi 0, %s22
      %p19 = scmp.ge.s32.totalorder %s18, 6
      %s25 = sphi 0, %s37
      %s26 = sphi 0, %s33
      %s27 = sphi 0, %s25
      %s28 = sphi 0, %s26
      %s29 = sphi 0, %s27
      %s30 = sphi 0, %s28
      %s40 = sphi 0, %s42
      %s43 = sphi 0, %s40
      %s44 = sphi 0, %s43
      %s60 = sphi 0, %s44
      %s66 = sphi 0, %s68
      %s69 = sphi 0, %s66
      %s70 = sphi 0, %s69
      %s86 = sphi 0, %s70
      %s92 = sphi 0, %s94
      %s95 = sphi 0, %s92
      %s96 = sphi 0, %s95
      %s112 = sphi 0, %s96
      %s118 = sphi 0, %s120
      %s121 = sphi 0, %s118
      %s122 = sphi 0, %s121
      %s138 = sphi 0, %s122
      %s142 = sphi 0, %s142
      %s144 = sphi 0, %s142
      %s145 = sphi 0, %s144
      %s159 = sphi 0, %s145
      %s165 = sphi 0, %s167
      %s168 = sphi 0, %s165
      %s169 = sphi 0, %s168
      %s185 = sphi 0, %s169
    $region4: #{tpu_custom_call.1} parent=1 // loop_header_branch
      %21 = sbr.rel (%p19) target = $region8
    $region5: #{tpu_custom_call.1} parent=1 // loop_body
      %s23 = ssub.s32 %s18, 1
      %s24 = ssub.s32 %s18, 2
      %s31 = sadd.s32 1, %s26
      %p32 = scmp.ge.s32.totalorder %s31, 1
      %s33 = scalar_select %p32, 0, %s31
      %s34 = sadd.s32 1, %s25
      %s35 = scalar_select %p32, %s34, %s25
      %p36 = scmp.ge.s32.totalorder %s35, 4
      %s37 = scalar_select %p36, 0, %s35
      %s38 = ssub.s32 %s25, %s37
      %p39 = scmp.eq.s32.totalorder %s38, 0
      %s41 = sadd.s32 %s40, 1
      %s42 = scalar_select %p39, %s40, %s41
      %p45 = pneg %p39
      %p46 = scmp.eq.s32.totalorder %s18, 3
      %p47 = por %p45, %p46
      %p48 = scmp.ne.s32.totalorder %s40, %s43
      %p49 = scmp.eq.s32.totalorder %s18, 0
      %p50 = por %p48, %p49
      %p51 = scmp.ne.s32.totalorder %s40, %s43
      %p52 = scmp.eq.s32.totalorder %s23, 3
      %p53 = por %p51, %p52
      %p54 = scmp.ne.s32.totalorder %s43, %s44
      %p55 = scmp.eq.s32.totalorder %s23, 0
      %p56 = por %p54, %p55
      %p57 = scmp.ne.s32.totalorder %s43, %s44
      %p58 = scmp.eq.s32.totalorder %s24, 3
      %p59 = por %p57, %p58
      %p61 = scmp.ne.s32.totalorder %s44, %s60
      %p62 = scmp.eq.s32.totalorder %s24, 0
      %p63 = por %p61, %p62
      %s64 = ssub.s32 %s26, %s33
      %p65 = scmp.eq.s32.totalorder %s64, 0
      %s67 = sadd.s32 %s66, 1
      %s68 = scalar_select %p65, %s66, %s67
      %p71 = pneg %p65
      %p72 = scmp.eq.s32.totalorder %s18, 3
      %p73 = por %p71, %p72
      %p74 = scmp.ne.s32.totalorder %s66, %s69
      %p75 = scmp.eq.s32.totalorder %s18, 0
      %p76 = por %p74, %p75
      %p77 = scmp.ne.s32.totalorder %s66, %s69
      %p78 = scmp.eq.s32.totalorder %s23, 3
      %p79 = por %p77, %p78
      %p80 = scmp.ne.s32.totalorder %s69, %s70
      %p81 = scmp.eq.s32.totalorder %s23, 0
      %p82 = por %p80, %p81
      %p83 = scmp.ne.s32.totalorder %s69, %s70
      %p84 = scmp.eq.s32.totalorder %s24, 3
      %p85 = por %p83, %p84
      %p87 = scmp.ne.s32.totalorder %s70, %s86
      %p88 = scmp.eq.s32.totalorder %s24, 0
      %p89 = por %p87, %p88
      %s90 = ssub.s32 %s26, %s33
      %p91 = scmp.eq.s32.totalorder %s90, 0
      %s93 = sadd.s32 %s92, 1
      %s94 = scalar_select %p91, %s92, %s93
      %p97 = pneg %p91
      %p98 = scmp.eq.s32.totalorder %s18, 3
      %p99 = por %p97, %p98
      %p100 = scmp.ne.s32.totalorder %s92, %s95
      %p101 = scmp.eq.s32.totalorder %s18, 0
      %p102 = por %p100, %p101
      %p103 = scmp.ne.s32.totalorder %s92, %s95
      %p104 = scmp.eq.s32.totalorder %s23, 3
      %p105 = por %p103, %p104
      %p106 = scmp.ne.s32.totalorder %s95, %s96
      %p107 = scmp.eq.s32.totalorder %s23, 0
      %p108 = por %p106, %p107
      %p109 = scmp.ne.s32.totalorder %s95, %s96
      %p110 = scmp.eq.s32.totalorder %s24, 3
      %p111 = por %p109, %p110
      %p113 = scmp.ne.s32.totalorder %s96, %s112
      %p114 = scmp.eq.s32.totalorder %s24, 0
      %p115 = por %p113, %p114
      %s116 = ssub.s32 %s26, %s33
      %p117 = scmp.eq.s32.totalorder %s116, 0
      %s119 = sadd.s32 %s118, 1
      %s120 = scalar_select %p117, %s118, %s119
      %p123 = pneg %p117
      %p124 = scmp.eq.s32.totalorder %s18, 3
      %p125 = por %p123, %p124
      %p126 = scmp.ne.s32.totalorder %s118, %s121
      %p127 = scmp.eq.s32.totalorder %s18, 0
      %p128 = por %p126, %p127
      %p129 = scmp.ne.s32.totalorder %s118, %s121
      %p130 = scmp.eq.s32.totalorder %s23, 3
      %p131 = por %p129, %p130
      %p132 = scmp.ne.s32.totalorder %s121, %s122
      %p133 = scmp.eq.s32.totalorder %s23, 0
      %p134 = por %p132, %p133
      %p135 = scmp.ne.s32.totalorder %s121, %s122
      %p136 = scmp.eq.s32.totalorder %s24, 3
      %p137 = por %p135, %p136
      %p139 = scmp.ne.s32.totalorder %s122, %s138
      %p140 = scmp.eq.s32.totalorder %s24, 0
      %p141 = por %p139, %p140
      %s143 = sadd.s32 %s142, 1
      %p146 = scmp.eq.s32.totalorder %s18, 3
      %p147 = scmp.ne.s32.totalorder %s142, %s144
      %p148 = scmp.eq.s32.totalorder %s18, 0
      %p149 = por %p147, %p148
      %p150 = scmp.ne.s32.totalorder %s142, %s144
      %p151 = scmp.eq.s32.totalorder %s23, 3
      %p152 = por %p150, %p151
      %p153 = scmp.ne.s32.totalorder %s144, %s145
      %p154 = scmp.eq.s32.totalorder %s23, 0
      %p155 = por %p153, %p154
      %p156 = scmp.ne.s32.totalorder %s144, %s145
      %p157 = scmp.eq.s32.totalorder %s24, 3
      %p158 = por %p156, %p157
      %p160 = scmp.ne.s32.totalorder %s145, %s159
      %p161 = scmp.eq.s32.totalorder %s24, 0
      %p162 = por %p160, %p161
      %s163 = ssub.s32 %s25, %s37
      %p164 = scmp.eq.s32.totalorder %s163, 0
      %s166 = sadd.s32 %s165, 1
      %s167 = scalar_select %p164, %s165, %s166
      %p170 = pneg %p164
      %p171 = scmp.eq.s32.totalorder %s18, 3
      %p172 = por %p170, %p171
      %p173 = scmp.ne.s32.totalorder %s165, %s168
      %p174 = scmp.eq.s32.totalorder %s18, 0
      %p175 = por %p173, %p174
      %p176 = scmp.ne.s32.totalorder %s165, %s168
      %p177 = scmp.eq.s32.totalorder %s23, 3
      %p178 = por %p176, %p177
      %p179 = scmp.ne.s32.totalorder %s168, %s169
      %p180 = scmp.eq.s32.totalorder %s23, 0
      %p181 = por %p179, %p180
      %p182 = scmp.ne.s32.totalorder %s168, %s169
      %p183 = scmp.eq.s32.totalorder %s24, 3
      %p184 = por %p182, %p183
      %p186 = scmp.ne.s32.totalorder %s169, %s185
      %p187 = scmp.eq.s32.totalorder %s24, 0
      %p188 = por %p186, %p187
      %p189 = scmp.le.s32.totalorder 1, %s18
      %p190 = scmp.lt.s32.totalorder %s18, 5
      %p191 = pnand %p189, %p190
      %p192 = pneg %p191
      // Predicated region
      $region9: #{tpu_custom_call.1} parent=5 // pred_check
        _
      $region10: #{tpu_custom_call.1} parent=5 // pred_check_branch
        %194 = sbr.rel (%p191) target = $region12
      $region11: #{tpu_custom_call.1} parent=5 // pred_region
        %s195 = ssub.s32 %s18, 1
        // Predicated region
        $region13: #{tpu_custom_call.1} parent=11 // pred_check
          %p196 = pneg %p82
        $region14: #{tpu_custom_call.1} parent=11 // pred_check_branch
          %198 = sbr.rel (%p196) target = $region16
        $region15: #{tpu_custom_call.1} parent=11 // pred_region
          %s199 = smul.u32 2, %s28
          %s201 = ssub.s32 4096, 4096
          %202 = vsyncadd [#allocation7], %s201
          %s203 = smul.addr %s199, 128
          %s204 = scalar_lea.hbm %s1, %s203
          %s205 = sshll.u32 [#allocation6], 4
          %s206 = int_to_ptr.vmem [resolvable:$true] %s205
          %211 = dma.hbm_to_vmem [thread:$0]  %s204, 4096, %s206, [#allocation7], 256, 256, 16
        $region16: #{tpu_custom_call.1} parent=11 // pred_fallthru
          _
        // Predicated region
        $region17: #{tpu_custom_call.1} parent=11 // pred_check
          %p212 = pneg %p108
        $region18: #{tpu_custom_call.1} parent=11 // pred_check_branch
          %214 = sbr.rel (%p212) target = $region20
        $region19: #{tpu_custom_call.1} parent=11 // pred_region
          %s215 = smul.u32 2, %s28
          %p216 = scmp.lt.s32.totalorder %s215, 1
          %s217 = scalar_select %p216, %s215, 1
          %s218 = scalar_lea.vmem %s2, %s217
          %s219 = smul.u32 2, %s28
        $region20: #{tpu_custom_call.1} parent=11 // pred_fallthru
          _
        // Predicated region
        $region21: #{tpu_custom_call.1} parent=11 // pred_check
          %p220 = pneg %p134
        $region22: #{tpu_custom_call.1} parent=11 // pred_check_branch
          %222 = sbr.rel (%p220) target = $region24
        $region23: #{tpu_custom_call.1} parent=11 // pred_region
          %s223 = smul.u32 32, %s28
          %s225 = ssub.s32 4096, 4096
          %226 = vsyncadd [#allocation7], %s225
          %s227 = smul.addr %s223, 128
          %s228 = scalar_lea.hbm %s3, %s227
          %s229 = sshll.u32 [#allocation8], 4
          %s230 = int_to_ptr.vmem [resolvable:$true] %s229
          %235 = dma.hbm_to_vmem [thread:$0]  %s228, 4096, %s230, [#allocation7], 128, 128, 8
        $region24: #{tpu_custom_call.1} parent=11 // pred_fallthru
          _
        // Predicated region
        $region25: #{tpu_custom_call.1} parent=11 // pred_check
          %p236 = pneg %p155
        $region26: #{tpu_custom_call.1} parent=11 // pred_check_branch
          %238 = sbr.rel (%p236) target = $region28
        $region27: #{tpu_custom_call.1} parent=11 // pred_region
          _
        $region28: #{tpu_custom_call.1} parent=11 // pred_fallthru
          _
      $region12: #{tpu_custom_call.1} parent=5 // pred_fallthru
        _
      %p239 = scmp.lt.s32.totalorder %s18, 4
      // Predicated region
      $region29: #{tpu_custom_call.1} parent=5 // pred_check
        %p240 = pneg %p239
      $region30: #{tpu_custom_call.1} parent=5 // pred_check_branch
        %242 = sbr.rel (%p240) target = $region32
      $region31: #{tpu_custom_call.1} parent=5 // pred_region
        // Predicated region
        $region33: #{tpu_custom_call.1} parent=31 // pred_check
          %p243 = pneg %p50
        $region34: #{tpu_custom_call.1} parent=31 // pred_check_branch
          %245 = sbr.rel (%p243) target = $region36
        $region35: #{tpu_custom_call.1} parent=31 // pred_region
          %s246 = sand.u32 %s40, 1
          %s247 = scalar_lea.sflag [#allocation4], %s246
          %s248 = sand.u32 %s40, 1
          %s249 = smul.addr %s248, 256
          %s250 = scalar_lea.vmem [#allocation3], %s249
          %s251 = smul.u32 32, %s25
          %s253 = ssub.s32 4096, 4096
          %254 = vsyncadd %s247, %s253
          %s255 = smul.addr %s251, 128
          %s256 = scalar_lea.hbm %s0, %s255
          %s257 = sshll.u32 %s250, 4
          %s258 = int_to_ptr.vmem [resolvable:$true] %s257
          %263 = dma.hbm_to_vmem [thread:$0]  %s256, 4096, %s258, %s247, 128, 128, 8
        $region36: #{tpu_custom_call.1} parent=31 // pred_fallthru
          _
      $region32: #{tpu_custom_call.1} parent=5 // pred_fallthru
        _
      %p264 = scmp.le.s32.totalorder 1, %s18
      %p265 = scmp.lt.s32.totalorder %s18, 5
      %p266 = pnand %p264, %p265
      %p267 = pneg %p266
      // Predicated region
      $region37: #{tpu_custom_call.1} parent=5 // pred_check
        _
      $region38: #{tpu_custom_call.1} parent=5 // pred_check_branch
        %269 = sbr.rel (%p266) target = $region40
      $region39: #{tpu_custom_call.1} parent=5 // pred_region
        %s270 = ssub.s32 %s18, 1
        %s271 = sand.u32 %s43, 1
        %s272 = scalar_lea.sflag [#allocation4], %s271
        %s273 = sand.u32 %s43, 1
        %s274 = smul.addr %s273, 256
        %s275 = scalar_lea.vmem [#allocation3], %s274
        // Predicated region
        $region41: #{tpu_custom_call.1} parent=39 // pred_check
          %p276 = pneg %p56
        $region42: #{tpu_custom_call.1} parent=39 // pred_check_branch
          %278 = sbr.rel (%p276) target = $region44
        $region43: #{tpu_custom_call.1} parent=39 // pred_region
          %279 = dma.done %s272, 4096
        $region44: #{tpu_custom_call.1} parent=39 // pred_fallthru
          _
        // Predicated region
        $region45: #{tpu_custom_call.1} parent=39 // pred_check
          %p280 = pneg %p82
        $region46: #{tpu_custom_call.1} parent=39 // pred_check_branch
          %282 = sbr.rel (%p280) target = $region48
        $region47: #{tpu_custom_call.1} parent=39 // pred_region
          %283 = dma.done [#allocation7], 4096
        $region48: #{tpu_custom_call.1} parent=39 // pred_fallthru
          _
        // Predicated region
        $region49: #{tpu_custom_call.1} parent=39 // pred_check
          %p284 = pneg %p134
        $region50: #{tpu_custom_call.1} parent=39 // pred_check_branch
          %286 = sbr.rel (%p284) target = $region52
        $region51: #{tpu_custom_call.1} parent=39 // pred_region
          %287 = dma.done [#allocation7], 4096
        $region52: #{tpu_custom_call.1} parent=39 // pred_fallthru
          _
        %s288 = sand.u32 %s43, 1
        %s289 = scalar_lea.sflag [#allocation4], %s288
        %s290 = sand.u32 %s43, 1
        %s291 = smul.addr %s290, 256
        %s292 = scalar_lea.vmem [#allocation3], %s291
        %p293 = pneg %p56
        %p294 = pneg %p53
        %p295 = pneg %p82
        %p296 = pneg %p79
        %s297 = smul.u32 2, %s28
        %p298 = scmp.lt.s32.totalorder %s297, 1
        %s299 = scalar_select %p298, %s297, 1
        %s300 = scalar_lea.vmem %s2, %s299
        %p301 = pneg %p108
        %p302 = pneg %p105
        %p303 = pneg %p134
        %p304 = pneg %p131
        %p305 = pneg %p155
        %p306 = pneg %p152
        %p307 = pneg %p181
        %p308 = pneg %p178
        %s309 = sand.u32 %s168, 1
        %s310 = scalar_lea.sflag [#allocation5], %s309
        %s311 = sand.u32 %s168, 1
        %s312 = smul.addr %s311, 256
        %s313 = scalar_lea.vmem [#allocation9], %s312
        %s314 = smul.u32 32, %s27
        %s315 = smul.u32 2, %s28
        %s316 = smul.u32 2, %s28
        %p317 = scmp.lt.s32.totalorder %s316, 1
        %s318 = scalar_select %p317, %s316, 1
        %s319 = scalar_lea.vmem %s2, %s318
        %s320 = smul.u32 2, %s28
        %s321 = smul.u32 32, %s28
        %s322 = smul.u32 32, %s27
        %p323 = scmp.eq.s32.totalorder %s28, 0
        // Predicated region
        $region53: #{tpu_custom_call.1} parent=39 // pred_check
          %p324 = pneg %p323
        $region54: #{tpu_custom_call.1} parent=39 // pred_check_branch
          %326 = sbr.rel (%p324) target = $region56
        $region55: #{tpu_custom_call.1} parent=39 // pred_region
          %327 = vst [vmem:[#allocation2] sm:$0xff] 0.0
          %328 = vst [vmem:[#allocation2 + $0x8] sm:$0xff] 0.0
          %329 = vst [vmem:[#allocation2 + $0x10] sm:$0xff] 0.0
          %330 = vst [vmem:[#allocation2 + $0x18] sm:$0xff] 0.0
          %331 = vst [vmem:[#allocation2 + $0x20] sm:$0xff] 0.0
          %332 = vst [vmem:[#allocation2 + $0x28] sm:$0xff] 0.0
          %333 = vst [vmem:[#allocation2 + $0x30] sm:$0xff] 0.0
          %334 = vst [vmem:[#allocation2 + $0x38] sm:$0xff] 0.0
          %335 = vst [vmem:[#allocation2 + $0x40] sm:$0xff] 0.0
          %336 = vst [vmem:[#allocation2 + $0x48] sm:$0xff] 0.0
          %337 = vst [vmem:[#allocation2 + $0x50] sm:$0xff] 0.0
          %338 = vst [vmem:[#allocation2 + $0x58] sm:$0xff] 0.0
          %339 = vst [vmem:[#allocation2 + $0x60] sm:$0xff] 0.0
          %340 = vst [vmem:[#allocation2 + $0x68] sm:$0xff] 0.0
          %341 = vst [vmem:[#allocation2 + $0x70] sm:$0xff] 0.0
          %342 = vst [vmem:[#allocation2 + $0x78] sm:$0xff] 0.0
          %343 = vst [vmem:[#allocation2 + $0x80] sm:$0xff] 0.0
          %344 = vst [vmem:[#allocation2 + $0x88] sm:$0xff] 0.0
          %345 = vst [vmem:[#allocation2 + $0x90] sm:$0xff] 0.0
          %346 = vst [vmem:[#allocation2 + $0x98] sm:$0xff] 0.0
          %347 = vst [vmem:[#allocation2 + $0xa0] sm:$0xff] 0.0
          %348 = vst [vmem:[#allocation2 + $0xa8] sm:$0xff] 0.0
          %349 = vst [vmem:[#allocation2 + $0xb0] sm:$0xff] 0.0
          %350 = vst [vmem:[#allocation2 + $0xb8] sm:$0xff] 0.0
          %351 = vst [vmem:[#allocation2 + $0xc0] sm:$0xff] 0.0
          %352 = vst [vmem:[#allocation2 + $0xc8] sm:$0xff] 0.0
          %353 = vst [vmem:[#allocation2 + $0xd0] sm:$0xff] 0.0
          %354 = vst [vmem:[#allocation2 + $0xd8] sm:$0xff] 0.0
          %355 = vst [vmem:[#allocation2 + $0xe0] sm:$0xff] 0.0
          %356 = vst [vmem:[#allocation2 + $0xe8] sm:$0xff] 0.0
          %357 = vst [vmem:[#allocation2 + $0xf0] sm:$0xff] 0.0
          %358 = vst [vmem:[#allocation2 + $0xf8] sm:$0xff] 0.0
        $region56: #{tpu_custom_call.1} parent=39 // pred_fallthru
          _
        %v359 = vld [vmem:[%s275] sm:$0xff]
        %v360 = vld [vmem:[%s275 + $0x8] sm:$0xff]
        %v361 = vld [vmem:[%s275 + $0x10] sm:$0xff]
        %v362 = vld [vmem:[%s275 + $0x18] sm:$0xff]
        %v363 = vld [vmem:[%s275 + $0x20] sm:$0xff]
        %v364 = vld [vmem:[%s275 + $0x28] sm:$0xff]
        %v365 = vld [vmem:[%s275 + $0x30] sm:$0xff]
        %v366 = vld [vmem:[%s275 + $0x38] sm:$0xff]
        %v367 = vld [vmem:[%s275 + $0x40] sm:$0xff]
        %v368 = vld [vmem:[%s275 + $0x48] sm:$0xff]
        %v369 = vld [vmem:[%s275 + $0x50] sm:$0xff]
        %v370 = vld [vmem:[%s275 + $0x58] sm:$0xff]
        %v371 = vld [vmem:[%s275 + $0x60] sm:$0xff]
        %v372 = vld [vmem:[%s275 + $0x68] sm:$0xff]
        %v373 = vld [vmem:[%s275 + $0x70] sm:$0xff]
        %v374 = vld [vmem:[%s275 + $0x78] sm:$0xff]
        %v375 = vld [vmem:[%s275 + $0x80] sm:$0xff]
        %v376 = vld [vmem:[%s275 + $0x88] sm:$0xff]
        %v377 = vld [vmem:[%s275 + $0x90] sm:$0xff]
        %v378 = vld [vmem:[%s275 + $0x98] sm:$0xff]
        %v379 = vld [vmem:[%s275 + $0xa0] sm:$0xff]
        %v380 = vld [vmem:[%s275 + $0xa8] sm:$0xff]
        %v381 = vld [vmem:[%s275 + $0xb0] sm:$0xff]
        %v382 = vld [vmem:[%s275 + $0xb8] sm:$0xff]
        %v383 = vld [vmem:[%s275 + $0xc0] sm:$0xff]
        %v384 = vld [vmem:[%s275 + $0xc8] sm:$0xff]
        %v385 = vld [vmem:[%s275 + $0xd0] sm:$0xff]
        %v386 = vld [vmem:[%s275 + $0xd8] sm:$0xff]
        %v387 = vld [vmem:[%s275 + $0xe0] sm:$0xff]
        %v388 = vld [vmem:[%s275 + $0xe8] sm:$0xff]
        %v389 = vld [vmem:[%s275 + $0xf0] sm:$0xff]
        %v390 = vld [vmem:[%s275 + $0xf8] sm:$0xff]
        %v391 = vld [vmem:[#allocation6] sm:$0xff]
        %v392 = vld [vmem:[#allocation6 + $0x8] sm:$0xff]
        %v393 = vld [vmem:[#allocation6 + $0x10] sm:$0xff]
        %v394 = vld [vmem:[#allocation6 + $0x18] sm:$0xff]
        %v395 = vld [vmem:[#allocation6 + $0x20] sm:$0xff]
        %v396 = vld [vmem:[#allocation6 + $0x28] sm:$0xff]
        %v397 = vld [vmem:[#allocation6 + $0x30] sm:$0xff]
        %v398 = vld [vmem:[#allocation6 + $0x38] sm:$0xff]
        %v399 = vld [vmem:[#allocation6 + $0x40] sm:$0xff]
        %v400 = vld [vmem:[#allocation6 + $0x48] sm:$0xff]
        %v401 = vld [vmem:[#allocation6 + $0x50] sm:$0xff]
        %v402 = vld [vmem:[#allocation6 + $0x58] sm:$0xff]
        %v403 = vld [vmem:[#allocation6 + $0x60] sm:$0xff]
        %v404 = vld [vmem:[#allocation6 + $0x68] sm:$0xff]
        %v405 = vld [vmem:[#allocation6 + $0x70] sm:$0xff]
        %v406 = vld [vmem:[#allocation6 + $0x78] sm:$0xff]
        %v407 = vld [vmem:[#allocation6 + $0x80] sm:$0xff]
        %v408 = vld [vmem:[#allocation6 + $0x88] sm:$0xff]
        %v409 = vld [vmem:[#allocation6 + $0x90] sm:$0xff]
        %v410 = vld [vmem:[#allocation6 + $0x98] sm:$0xff]
        %v411 = vld [vmem:[#allocation6 + $0xa0] sm:$0xff]
        %v412 = vld [vmem:[#allocation6 + $0xa8] sm:$0xff]
        %v413 = vld [vmem:[#allocation6 + $0xb0] sm:$0xff]
        %v414 = vld [vmem:[#allocation6 + $0xb8] sm:$0xff]
        %v415 = vld [vmem:[#allocation6 + $0xc0] sm:$0xff]
        %v416 = vld [vmem:[#allocation6 + $0xc8] sm:$0xff]
        %v417 = vld [vmem:[#allocation6 + $0xd0] sm:$0xff]
        %v418 = vld [vmem:[#allocation6 + $0xd8] sm:$0xff]
        %v419 = vld [vmem:[#allocation6 + $0xe0] sm:$0xff]
        %v420 = vld [vmem:[#allocation6 + $0xe8] sm:$0xff]
        %v421 = vld [vmem:[#allocation6 + $0xf0] sm:$0xff]
        %v422 = vld [vmem:[#allocation6 + $0xf8] sm:$0xff]
        %v423 = vld [vmem:[%s319] sm:$0x3]
        %v425 = vlaneseq
        %v426 = vshrl.u32 %v425, 7
        %v427 = vsub.s32 0, %v426
        %v428 = vrot.slane %v423, %v427
        %v429 = vlaneseq
        %v430 = vshrl.u32 %v429, 7
        %v431 = vsub.s32 1, %v430
        %v432 = vrot.slane %v423, %v431
        %435 = vmatprep.subr.mxu0 %v422
        %436 = vmatpush1.msra.mxu0 %v421
        %437 = vmatprep.subr.mxu0 %v420
        %438 = vmatpush1.msra.mxu0 %v419
        %439 = vmatprep.subr.mxu0 %v418
        %440 = vmatpush1.msra.mxu0 %v417
        %441 = vmatprep.subr.mxu0 %v416
        %442 = vmatpush1.msra.mxu0 %v415
        %443 = vmatprep.subr.mxu0 %v414
        %444 = vmatpush1.msra.mxu0 %v413
        %445 = vmatprep.subr.mxu0 %v412
        %446 = vmatpush1.msra.mxu0 %v411
        %447 = vmatprep.subr.mxu0 %v410
        %448 = vmatpush1.msra.mxu0 %v409
        %449 = vmatprep.subr.mxu0 %v408
        %450 = vmatpush1.msra.mxu0 %v407
        %451 = vmatprep.subr.mxu0 %v406
        %452 = vmatpush1.msra.mxu0 %v405
        %453 = vmatprep.subr.mxu0 %v404
        %454 = vmatpush1.msra.mxu0 %v403
        %455 = vmatprep.subr.mxu0 %v402
        %456 = vmatpush1.msra.mxu0 %v401
        %457 = vmatprep.subr.mxu0 %v400
        %458 = vmatpush1.msra.mxu0 %v399
        %459 = vmatprep.subr.mxu0 %v398
        %460 = vmatpush1.msra.mxu0 %v397
        %461 = vmatprep.subr.mxu0 %v396
        %462 = vmatpush1.msra.mxu0 %v395
        %463 = vmatprep.subr.mxu0 %v394
        %464 = vmatpush1.msra.mxu0 %v393
        %465 = vmatprep.subr.mxu0 %v392
        %466 = vmatpush1.msra.mxu0 %v391
        %467 = vmatprep.subr.mxu0 0.0
        %468 = vmatpush2.msra.mxu0 0.0
        %469 = vmatprep.subr.mxu0 0.0
        %470 = vmatpush2.msra.mxu0 0.0
        %471 = vmatprep.subr.mxu0 0.0
        %472 = vmatpush2.msra.mxu0 0.0
        %473 = vmatprep.subr.mxu0 0.0
        %474 = vmatpush2.msra.mxu0 0.0
        %475 = vmatprep.subr.mxu0 0.0
        %476 = vmatpush2.msra.mxu0 0.0
        %477 = vmatprep.subr.mxu0 0.0
        %478 = vmatpush2.msra.mxu0 0.0
        %479 = vmatprep.subr.mxu0 0.0
        %480 = vmatpush2.msra.mxu0 0.0
        %481 = vmatprep.subr.mxu0 0.0
        %482 = vmatpush2.msra.mxu0 0.0
        %483 = vmatprep.subr.mxu0 0.0
        %484 = vmatpush2.msra.mxu0 0.0
        %485 = vmatprep.subr.mxu0 0.0
        %486 = vmatpush2.msra.mxu0 0.0
        %487 = vmatprep.subr.mxu0 0.0
        %488 = vmatpush2.msra.mxu0 0.0
        %489 = vmatprep.subr.mxu0 0.0
        %490 = vmatpush2.msra.mxu0 0.0
        %491 = vmatprep.subr.mxu0 0.0
        %492 = vmatpush2.msra.mxu0 0.0
        %493 = vmatprep.subr.mxu0 0.0
        %494 = vmatpush2.msra.mxu0 0.0
        %495 = vmatprep.subr.mxu0 0.0
        %496 = vmatpush2.msra.mxu0 0.0
        %497 = vmatprep.subr.mxu0 0.0
        %498 = vmatpush2.msra.mxu0 0.0
        %499 = vmatprep.mubr.f32.mxu0 0.0
        %500 = vmatmul.mubr.f32.gmra.mxu0 %v359
        %v501 = vpop.f32.mrf.mxu0
        %v502 = vadd.f32 %v428, %v501
        %v503 = vpop.f32.mrf.mxu0
        %v504 = vadd.f32 %v432, %v503
        %505 = vmatprep.mubr.f32.mxu0 0.0
        %506 = vmatmul.mubr.f32.gmra.mxu0 %v360
        %v507 = vpop.f32.mrf.mxu0
        %v508 = vadd.f32 %v428, %v507
        %v509 = vpop.f32.mrf.mxu0
        %v510 = vadd.f32 %v432, %v509
        %511 = vmatprep.mubr.f32.mxu0 0.0
        %512 = vmatmul.mubr.f32.gmra.mxu0 %v361
        %v513 = vpop.f32.mrf.mxu0
        %v514 = vadd.f32 %v428, %v513
        %v515 = vpop.f32.mrf.mxu0
        %v516 = vadd.f32 %v432, %v515
        %517 = vmatprep.mubr.f32.mxu0 0.0
        %518 = vmatmul.mubr.f32.gmra.mxu0 %v362
        %v519 = vpop.f32.mrf.mxu0
        %v520 = vadd.f32 %v428, %v519
        %v521 = vpop.f32.mrf.mxu0
        %v522 = vadd.f32 %v432, %v521
        %523 = vmatprep.mubr.f32.mxu0 0.0
        %524 = vmatmul.mubr.f32.gmra.mxu0 %v363
        %v525 = vpop.f32.mrf.mxu0
        %v526 = vadd.f32 %v428, %v525
        %v527 = vpop.f32.mrf.mxu0
        %v528 = vadd.f32 %v432, %v527
        %529 = vmatprep.mubr.f32.mxu0 0.0
        %530 = vmatmul.mubr.f32.gmra.mxu0 %v364
        %v531 = vpop.f32.mrf.mxu0
        %v532 = vadd.f32 %v428, %v531
        %v533 = vpop.f32.mrf.mxu0
        %v534 = vadd.f32 %v432, %v533
        %535 = vmatprep.mubr.f32.mxu0 0.0
        %536 = vmatmul.mubr.f32.gmra.mxu0 %v365
        %v537 = vpop.f32.mrf.mxu0
        %v538 = vadd.f32 %v428, %v537
        %v539 = vpop.f32.mrf.mxu0
        %v540 = vadd.f32 %v432, %v539
        %541 = vmatprep.mubr.f32.mxu0 0.0
        %542 = vmatmul.mubr.f32.gmra.mxu0 %v366
        %v543 = vpop.f32.mrf.mxu0
        %v544 = vadd.f32 %v428, %v543
        %v545 = vpop.f32.mrf.mxu0
        %v546 = vadd.f32 %v432, %v545
        %547 = vmatprep.mubr.f32.mxu0 0.0
        %548 = vmatmul.mubr.f32.gmra.mxu0 %v367
        %v549 = vpop.f32.mrf.mxu0
        %v550 = vadd.f32 %v428, %v549
        %v551 = vpop.f32.mrf.mxu0
        %v552 = vadd.f32 %v432, %v551
        %553 = vmatprep.mubr.f32.mxu0 0.0
        %554 = vmatmul.mubr.f32.gmra.mxu0 %v368
        %v555 = vpop.f32.mrf.mxu0
        %v556 = vadd.f32 %v428, %v555
        %v557 = vpop.f32.mrf.mxu0
        %v558 = vadd.f32 %v432, %v557
        %559 = vmatprep.mubr.f32.mxu0 0.0
        %560 = vmatmul.mubr.f32.gmra.mxu0 %v369
        %v561 = vpop.f32.mrf.mxu0
        %v562 = vadd.f32 %v428, %v561
        %v563 = vpop.f32.mrf.mxu0
        %v564 = vadd.f32 %v432, %v563
        %565 = vmatprep.mubr.f32.mxu0 0.0
        %566 = vmatmul.mubr.f32.gmra.mxu0 %v370
        %v567 = vpop.f32.mrf.mxu0
        %v568 = vadd.f32 %v428, %v567
        %v569 = vpop.f32.mrf.mxu0
        %v570 = vadd.f32 %v432, %v569
        %571 = vmatprep.mubr.f32.mxu0 0.0
        %572 = vmatmul.mubr.f32.gmra.mxu0 %v371
        %v573 = vpop.f32.mrf.mxu0
        %v574 = vadd.f32 %v428, %v573
        %v575 = vpop.f32.mrf.mxu0
        %v576 = vadd.f32 %v432, %v575
        %577 = vmatprep.mubr.f32.mxu0 0.0
        %578 = vmatmul.mubr.f32.gmra.mxu0 %v372
        %v579 = vpop.f32.mrf.mxu0
        %v580 = vadd.f32 %v428, %v579
        %v581 = vpop.f32.mrf.mxu0
        %v582 = vadd.f32 %v432, %v581
        %583 = vmatprep.mubr.f32.mxu0 0.0
        %584 = vmatmul.mubr.f32.gmra.mxu0 %v373
        %v585 = vpop.f32.mrf.mxu0
        %v586 = vadd.f32 %v428, %v585
        %v587 = vpop.f32.mrf.mxu0
        %v588 = vadd.f32 %v432, %v587
        %589 = vmatprep.mubr.f32.mxu0 0.0
        %590 = vmatmul.mubr.f32.gmra.mxu0 %v374
        %v591 = vpop.f32.mrf.mxu0
        %v592 = vadd.f32 %v428, %v591
        %v593 = vpop.f32.mrf.mxu0
        %v594 = vadd.f32 %v432, %v593
        %595 = vmatprep.mubr.f32.mxu0 0.0
        %596 = vmatmul.mubr.f32.gmra.mxu0 %v375
        %v597 = vpop.f32.mrf.mxu0
        %v598 = vadd.f32 %v428, %v597
        %v599 = vpop.f32.mrf.mxu0
        %v600 = vadd.f32 %v432, %v599
        %601 = vmatprep.mubr.f32.mxu0 0.0
        %602 = vmatmul.mubr.f32.gmra.mxu0 %v376
        %v603 = vpop.f32.mrf.mxu0
        %v604 = vadd.f32 %v428, %v603
        %v605 = vpop.f32.mrf.mxu0
        %v606 = vadd.f32 %v432, %v605
        %607 = vmatprep.mubr.f32.mxu0 0.0
        %608 = vmatmul.mubr.f32.gmra.mxu0 %v377
        %v609 = vpop.f32.mrf.mxu0
        %v610 = vadd.f32 %v428, %v609
        %v611 = vpop.f32.mrf.mxu0
        %v612 = vadd.f32 %v432, %v611
        %613 = vmatprep.mubr.f32.mxu0 0.0
        %614 = vmatmul.mubr.f32.gmra.mxu0 %v378
        %v615 = vpop.f32.mrf.mxu0
        %v616 = vadd.f32 %v428, %v615
        %v617 = vpop.f32.mrf.mxu0
        %v618 = vadd.f32 %v432, %v617
        %619 = vmatprep.mubr.f32.mxu0 0.0
        %620 = vmatmul.mubr.f32.gmra.mxu0 %v379
        %v621 = vpop.f32.mrf.mxu0
        %v622 = vadd.f32 %v428, %v621
        %v623 = vpop.f32.mrf.mxu0
        %v624 = vadd.f32 %v432, %v623
        %625 = vmatprep.mubr.f32.mxu0 0.0
        %626 = vmatmul.mubr.f32.gmra.mxu0 %v380
        %v627 = vpop.f32.mrf.mxu0
        %v628 = vadd.f32 %v428, %v627
        %v629 = vpop.f32.mrf.mxu0
        %v630 = vadd.f32 %v432, %v629
        %631 = vmatprep.mubr.f32.mxu0 0.0
        %632 = vmatmul.mubr.f32.gmra.mxu0 %v381
        %v633 = vpop.f32.mrf.mxu0
        %v634 = vadd.f32 %v428, %v633
        %v635 = vpop.f32.mrf.mxu0
        %v636 = vadd.f32 %v432, %v635
        %637 = vmatprep.mubr.f32.mxu0 0.0
        %638 = vmatmul.mubr.f32.gmra.mxu0 %v382
        %v639 = vpop.f32.mrf.mxu0
        %v640 = vadd.f32 %v428, %v639
        %v641 = vpop.f32.mrf.mxu0
        %v642 = vadd.f32 %v432, %v641
        %643 = vmatprep.mubr.f32.mxu0 0.0
        %644 = vmatmul.mubr.f32.gmra.mxu0 %v383
        %v645 = vpop.f32.mrf.mxu0
        %v646 = vadd.f32 %v428, %v645
        %v647 = vpop.f32.mrf.mxu0
        %v648 = vadd.f32 %v432, %v647
        %649 = vmatprep.mubr.f32.mxu0 0.0
        %650 = vmatmul.mubr.f32.gmra.mxu0 %v384
        %v651 = vpop.f32.mrf.mxu0
        %v652 = vadd.f32 %v428, %v651
        %v653 = vpop.f32.mrf.mxu0
        %v654 = vadd.f32 %v432, %v653
        %655 = vmatprep.mubr.f32.mxu0 0.0
        %656 = vmatmul.mubr.f32.gmra.mxu0 %v385
        %v657 = vpop.f32.mrf.mxu0
        %v658 = vadd.f32 %v428, %v657
        %v659 = vpop.f32.mrf.mxu0
        %v660 = vadd.f32 %v432, %v659
        %661 = vmatprep.mubr.f32.mxu0 0.0
        %662 = vmatmul.mubr.f32.gmra.mxu0 %v386
        %v663 = vpop.f32.mrf.mxu0
        %v664 = vadd.f32 %v428, %v663
        %v665 = vpop.f32.mrf.mxu0
        %v666 = vadd.f32 %v432, %v665
        %667 = vmatprep.mubr.f32.mxu0 0.0
        %668 = vmatmul.mubr.f32.gmra.mxu0 %v387
        %v669 = vpop.f32.mrf.mxu0
        %v670 = vadd.f32 %v428, %v669
        %v671 = vpop.f32.mrf.mxu0
        %v672 = vadd.f32 %v432, %v671
        %673 = vmatprep.mubr.f32.mxu0 0.0
        %674 = vmatmul.mubr.f32.gmra.mxu0 %v388
        %v675 = vpop.f32.mrf.mxu0
        %v676 = vadd.f32 %v428, %v675
        %v677 = vpop.f32.mrf.mxu0
        %v678 = vadd.f32 %v432, %v677
        %679 = vmatprep.mubr.f32.mxu0 0.0
        %680 = vmatmul.mubr.f32.gmra.mxu0 %v389
        %v681 = vpop.f32.mrf.mxu0
        %v682 = vadd.f32 %v428, %v681
        %v683 = vpop.f32.mrf.mxu0
        %v684 = vadd.f32 %v432, %v683
        %685 = vmatprep.mubr.f32.mxu0 0.0
        %686 = vmatmul.mubr.f32.gmra.mxu0 %v390
        %v687 = vpop.f32.mrf.mxu0
        %v688 = vadd.f32 %v428, %v687
        %v689 = vpop.f32.mrf.mxu0
        %v690 = vadd.f32 %v432, %v689
        %691 = vdwg.mxu0
        %v692 = vmul.f32 %v502, 0.5
        %v693 = vmul.f32 %v504, 0.5
        %v694 = vmul.f32 %v508, 0.5
        %v695 = vmul.f32 %v510, 0.5
        %v696 = vmul.f32 %v514, 0.5
        %v697 = vmul.f32 %v516, 0.5
        %v698 = vmul.f32 %v520, 0.5
        %v699 = vmul.f32 %v522, 0.5
        %v700 = vmul.f32 %v526, 0.5
        %v701 = vmul.f32 %v528, 0.5
        %v702 = vmul.f32 %v532, 0.5
        %v703 = vmul.f32 %v534, 0.5
        %v704 = vmul.f32 %v538, 0.5
        %v705 = vmul.f32 %v540, 0.5
        %v706 = vmul.f32 %v544, 0.5
        %v707 = vmul.f32 %v546, 0.5
        %v708 = vmul.f32 %v550, 0.5
        %v709 = vmul.f32 %v552, 0.5
        %v710 = vmul.f32 %v556, 0.5
        %v711 = vmul.f32 %v558, 0.5
        %v712 = vmul.f32 %v562, 0.5
        %v713 = vmul.f32 %v564, 0.5
        %v714 = vmul.f32 %v568, 0.5
        %v715 = vmul.f32 %v570, 0.5
        %v716 = vmul.f32 %v574, 0.5
        %v717 = vmul.f32 %v576, 0.5
        %v718 = vmul.f32 %v580, 0.5
        %v719 = vmul.f32 %v582, 0.5
        %v720 = vmul.f32 %v586, 0.5
        %v721 = vmul.f32 %v588, 0.5
        %v722 = vmul.f32 %v592, 0.5
        %v723 = vmul.f32 %v594, 0.5
        %v724 = vmul.f32 %v598, 0.5
        %v725 = vmul.f32 %v600, 0.5
        %v726 = vmul.f32 %v604, 0.5
        %v727 = vmul.f32 %v606, 0.5
        %v728 = vmul.f32 %v610, 0.5
        %v729 = vmul.f32 %v612, 0.5
        %v730 = vmul.f32 %v616, 0.5
        %v731 = vmul.f32 %v618, 0.5
        %v732 = vmul.f32 %v622, 0.5
        %v733 = vmul.f32 %v624, 0.5
        %v734 = vmul.f32 %v628, 0.5
        %v735 = vmul.f32 %v630, 0.5
        %v736 = vmul.f32 %v634, 0.5
        %v737 = vmul.f32 %v636, 0.5
        %v738 = vmul.f32 %v640, 0.5
        %v739 = vmul.f32 %v642, 0.5
        %v740 = vmul.f32 %v646, 0.5
        %v741 = vmul.f32 %v648, 0.5
        %v742 = vmul.f32 %v652, 0.5
        %v743 = vmul.f32 %v654, 0.5
        %v744 = vmul.f32 %v658, 0.5
        %v745 = vmul.f32 %v660, 0.5
        %v746 = vmul.f32 %v664, 0.5
        %v747 = vmul.f32 %v666, 0.5
        %v748 = vmul.f32 %v670, 0.5
        %v749 = vmul.f32 %v672, 0.5
        %v750 = vmul.f32 %v676, 0.5
        %v751 = vmul.f32 %v678, 0.5
        %v752 = vmul.f32 %v682, 0.5
        %v753 = vmul.f32 %v684, 0.5
        %v754 = vmul.f32 %v688, 0.5
        %v755 = vmul.f32 %v690, 0.5
        %v756 = vmul.f32 %v502, 0.70710677
        %v757 = vmul.f32 %v504, 0.70710677
        %v758 = vmul.f32 %v508, 0.70710677
        %v759 = vmul.f32 %v510, 0.70710677
        %v760 = vmul.f32 %v514, 0.70710677
        %v761 = vmul.f32 %v516, 0.70710677
        %v762 = vmul.f32 %v520, 0.70710677
        %v763 = vmul.f32 %v522, 0.70710677
        %v764 = vmul.f32 %v526, 0.70710677
        %v765 = vmul.f32 %v528, 0.70710677
        %v766 = vmul.f32 %v532, 0.70710677
        %v767 = vmul.f32 %v534, 0.70710677
        %v768 = vmul.f32 %v538, 0.70710677
        %v769 = vmul.f32 %v540, 0.70710677
        %v770 = vmul.f32 %v544, 0.70710677
        %v771 = vmul.f32 %v546, 0.70710677
        %v772 = vmul.f32 %v550, 0.70710677
        %v773 = vmul.f32 %v552, 0.70710677
        %v774 = vmul.f32 %v556, 0.70710677
        %v775 = vmul.f32 %v558, 0.70710677
        %v776 = vmul.f32 %v562, 0.70710677
        %v777 = vmul.f32 %v564, 0.70710677
        %v778 = vmul.f32 %v568, 0.70710677
        %v779 = vmul.f32 %v570, 0.70710677
        %v780 = vmul.f32 %v574, 0.70710677
        %v781 = vmul.f32 %v576, 0.70710677
        %v782 = vmul.f32 %v580, 0.70710677
        %v783 = vmul.f32 %v582, 0.70710677
        %v784 = vmul.f32 %v586, 0.70710677
        %v785 = vmul.f32 %v588, 0.70710677
        %v786 = vmul.f32 %v592, 0.70710677
        %v787 = vmul.f32 %v594, 0.70710677
        %v788 = vmul.f32 %v598, 0.70710677
        %v789 = vmul.f32 %v600, 0.70710677
        %v790 = vmul.f32 %v604, 0.70710677
        %v791 = vmul.f32 %v606, 0.70710677
        %v792 = vmul.f32 %v610, 0.70710677
        %v793 = vmul.f32 %v612, 0.70710677
        %v794 = vmul.f32 %v616, 0.70710677
        %v795 = vmul.f32 %v618, 0.70710677
        %v796 = vmul.f32 %v622, 0.70710677
        %v797 = vmul.f32 %v624, 0.70710677
        %v798 = vmul.f32 %v628, 0.70710677
        %v799 = vmul.f32 %v630, 0.70710677
        %v800 = vmul.f32 %v634, 0.70710677
        %v801 = vmul.f32 %v636, 0.70710677
        %v802 = vmul.f32 %v640, 0.70710677
        %v803 = vmul.f32 %v642, 0.70710677
        %v804 = vmul.f32 %v646, 0.70710677
        %v805 = vmul.f32 %v648, 0.70710677
        %v806 = vmul.f32 %v652, 0.70710677
        %v807 = vmul.f32 %v654, 0.70710677
        %v808 = vmul.f32 %v658, 0.70710677
        %v809 = vmul.f32 %v660, 0.70710677
        %v810 = vmul.f32 %v664, 0.70710677
        %v811 = vmul.f32 %v666, 0.70710677
        %v812 = vmul.f32 %v670, 0.70710677
        %v813 = vmul.f32 %v672, 0.70710677
        %v814 = vmul.f32 %v676, 0.70710677
        %v815 = vmul.f32 %v678, 0.70710677
        %v816 = vmul.f32 %v682, 0.70710677
        %v817 = vmul.f32 %v684, 0.70710677
        %v818 = vmul.f32 %v688, 0.70710677
        %v819 = vmul.f32 %v690, 0.70710677
        %v820 = verf.f32.pop %v756
        %v821 = verf.f32.pop %v757
        %v822 = verf.f32.pop %v758
        %v823 = verf.f32.pop %v759
        %v824 = verf.f32.pop %v760
        %v825 = verf.f32.pop %v761
        %v826 = verf.f32.pop %v762
        %v827 = verf.f32.pop %v763
        %v828 = verf.f32.pop %v764
        %v829 = verf.f32.pop %v765
        %v830 = verf.f32.pop %v766
        %v831 = verf.f32.pop %v767
        %v832 = verf.f32.pop %v768
        %v833 = verf.f32.pop %v769
        %v834 = verf.f32.pop %v770
        %v835 = verf.f32.pop %v771
        %v836 = verf.f32.pop %v772
        %v837 = verf.f32.pop %v773
        %v838 = verf.f32.pop %v774
        %v839 = verf.f32.pop %v775
        %v840 = verf.f32.pop %v776
        %v841 = verf.f32.pop %v777
        %v842 = verf.f32.pop %v778
        %v843 = verf.f32.pop %v779
        %v844 = verf.f32.pop %v780
        %v845 = verf.f32.pop %v781
        %v846 = verf.f32.pop %v782
        %v847 = verf.f32.pop %v783
        %v848 = verf.f32.pop %v784
        %v849 = verf.f32.pop %v785
        %v850 = verf.f32.pop %v786
        %v851 = verf.f32.pop %v787
        %v852 = verf.f32.pop %v788
        %v853 = verf.f32.pop %v789
        %v854 = verf.f32.pop %v790
        %v855 = verf.f32.pop %v791
        %v856 = verf.f32.pop %v792
        %v857 = verf.f32.pop %v793
        %v858 = verf.f32.pop %v794
        %v859 = verf.f32.pop %v795
        %v860 = verf.f32.pop %v796
        %v861 = verf.f32.pop %v797
        %v862 = verf.f32.pop %v798
        %v863 = verf.f32.pop %v799
        %v864 = verf.f32.pop %v800
        %v865 = verf.f32.pop %v801
        %v866 = verf.f32.pop %v802
        %v867 = verf.f32.pop %v803
        %v868 = verf.f32.pop %v804
        %v869 = verf.f32.pop %v805
        %v870 = verf.f32.pop %v806
        %v871 = verf.f32.pop %v807
        %v872 = verf.f32.pop %v808
        %v873 = verf.f32.pop %v809
        %v874 = verf.f32.pop %v810
        %v875 = verf.f32.pop %v811
        %v876 = verf.f32.pop %v812
        %v877 = verf.f32.pop %v813
        %v878 = verf.f32.pop %v814
        %v879 = verf.f32.pop %v815
        %v880 = verf.f32.pop %v816
        %v881 = verf.f32.pop %v817
        %v882 = verf.f32.pop %v818
        %v883 = verf.f32.pop %v819
        %v884 = vadd.f32 %v820, 1.0
        %v885 = vadd.f32 %v821, 1.0
        %v886 = vadd.f32 %v822, 1.0
        %v887 = vadd.f32 %v823, 1.0
        %v888 = vadd.f32 %v824, 1.0
        %v889 = vadd.f32 %v825, 1.0
        %v890 = vadd.f32 %v826, 1.0
        %v891 = vadd.f32 %v827, 1.0
        %v892 = vadd.f32 %v828, 1.0
        %v893 = vadd.f32 %v829, 1.0
        %v894 = vadd.f32 %v830, 1.0
        %v895 = vadd.f32 %v831, 1.0
        %v896 = vadd.f32 %v832, 1.0
        %v897 = vadd.f32 %v833, 1.0
        %v898 = vadd.f32 %v834, 1.0
        %v899 = vadd.f32 %v835, 1.0
        %v900 = vadd.f32 %v836, 1.0
        %v901 = vadd.f32 %v837, 1.0
        %v902 = vadd.f32 %v838, 1.0
        %v903 = vadd.f32 %v839, 1.0
        %v904 = vadd.f32 %v840, 1.0
        %v905 = vadd.f32 %v841, 1.0
        %v906 = vadd.f32 %v842, 1.0
        %v907 = vadd.f32 %v843, 1.0
        %v908 = vadd.f32 %v844, 1.0
        %v909 = vadd.f32 %v845, 1.0
        %v910 = vadd.f32 %v846, 1.0
        %v911 = vadd.f32 %v847, 1.0
        %v912 = vadd.f32 %v848, 1.0
        %v913 = vadd.f32 %v849, 1.0
        %v914 = vadd.f32 %v850, 1.0
        %v915 = vadd.f32 %v851, 1.0
        %v916 = vadd.f32 %v852, 1.0
        %v917 = vadd.f32 %v853, 1.0
        %v918 = vadd.f32 %v854, 1.0
        %v919 = vadd.f32 %v855, 1.0
        %v920 = vadd.f32 %v856, 1.0
        %v921 = vadd.f32 %v857, 1.0
        %v922 = vadd.f32 %v858, 1.0
        %v923 = vadd.f32 %v859, 1.0
        %v924 = vadd.f32 %v860, 1.0
        %v925 = vadd.f32 %v861, 1.0
        %v926 = vadd.f32 %v862, 1.0
        %v927 = vadd.f32 %v863, 1.0
        %v928 = vadd.f32 %v864, 1.0
        %v929 = vadd.f32 %v865, 1.0
        %v930 = vadd.f32 %v866, 1.0
        %v931 = vadd.f32 %v867, 1.0
        %v932 = vadd.f32 %v868, 1.0
        %v933 = vadd.f32 %v869, 1.0
        %v934 = vadd.f32 %v870, 1.0
        %v935 = vadd.f32 %v871, 1.0
        %v936 = vadd.f32 %v872, 1.0
        %v937 = vadd.f32 %v873, 1.0
        %v938 = vadd.f32 %v874, 1.0
        %v939 = vadd.f32 %v875, 1.0
        %v940 = vadd.f32 %v876, 1.0
        %v941 = vadd.f32 %v877, 1.0
        %v942 = vadd.f32 %v878, 1.0
        %v943 = vadd.f32 %v879, 1.0
        %v944 = vadd.f32 %v880, 1.0
        %v945 = vadd.f32 %v881, 1.0
        %v946 = vadd.f32 %v882, 1.0
        %v947 = vadd.f32 %v883, 1.0
        %v948 = vmul.f32 %v692, %v884
        %v949 = vmul.f32 %v693, %v885
        %v950 = vmul.f32 %v694, %v886
        %v951 = vmul.f32 %v695, %v887
        %v952 = vmul.f32 %v696, %v888
        %v953 = vmul.f32 %v697, %v889
        %v954 = vmul.f32 %v698, %v890
        %v955 = vmul.f32 %v699, %v891
        %v956 = vmul.f32 %v700, %v892
        %v957 = vmul.f32 %v701, %v893
        %v958 = vmul.f32 %v702, %v894
        %v959 = vmul.f32 %v703, %v895
        %v960 = vmul.f32 %v704, %v896
        %v961 = vmul.f32 %v705, %v897
        %v962 = vmul.f32 %v706, %v898
        %v963 = vmul.f32 %v707, %v899
        %v964 = vmul.f32 %v708, %v900
        %v965 = vmul.f32 %v709, %v901
        %v966 = vmul.f32 %v710, %v902
        %v967 = vmul.f32 %v711, %v903
        %v968 = vmul.f32 %v712, %v904
        %v969 = vmul.f32 %v713, %v905
        %v970 = vmul.f32 %v714, %v906
        %v971 = vmul.f32 %v715, %v907
        %v972 = vmul.f32 %v716, %v908
        %v973 = vmul.f32 %v717, %v909
        %v974 = vmul.f32 %v718, %v910
        %v975 = vmul.f32 %v719, %v911
        %v976 = vmul.f32 %v720, %v912
        %v977 = vmul.f32 %v721, %v913
        %v978 = vmul.f32 %v722, %v914
        %v979 = vmul.f32 %v723, %v915
        %v980 = vmul.f32 %v724, %v916
        %v981 = vmul.f32 %v725, %v917
        %v982 = vmul.f32 %v726, %v918
        %v983 = vmul.f32 %v727, %v919
        %v984 = vmul.f32 %v728, %v920
        %v985 = vmul.f32 %v729, %v921
        %v986 = vmul.f32 %v730, %v922
        %v987 = vmul.f32 %v731, %v923
        %v988 = vmul.f32 %v732, %v924
        %v989 = vmul.f32 %v733, %v925
        %v990 = vmul.f32 %v734, %v926
        %v991 = vmul.f32 %v735, %v927
        %v992 = vmul.f32 %v736, %v928
        %v993 = vmul.f32 %v737, %v929
        %v994 = vmul.f32 %v738, %v930
        %v995 = vmul.f32 %v739, %v931
        %v996 = vmul.f32 %v740, %v932
        %v997 = vmul.f32 %v741, %v933
        %v998 = vmul.f32 %v742, %v934
        %v999 = vmul.f32 %v743, %v935
        %v1000 = vmul.f32 %v744, %v936
        %v1001 = vmul.f32 %v745, %v937
        %v1002 = vmul.f32 %v746, %v938
        %v1003 = vmul.f32 %v747, %v939
        %v1004 = vmul.f32 %v748, %v940
        %v1005 = vmul.f32 %v749, %v941
        %v1006 = vmul.f32 %v750, %v942
        %v1007 = vmul.f32 %v751, %v943
        %v1008 = vmul.f32 %v752, %v944
        %v1009 = vmul.f32 %v753, %v945
        %v1010 = vmul.f32 %v754, %v946
        %v1011 = vmul.f32 %v755, %v947
        %v1012 = vld [vmem:[#allocation2] sm:$0xff]
        %v1013 = vld [vmem:[#allocation2 + $0x8] sm:$0xff]
        %v1014 = vld [vmem:[#allocation2 + $0x10] sm:$0xff]
        %v1015 = vld [vmem:[#allocation2 + $0x18] sm:$0xff]
        %v1016 = vld [vmem:[#allocation2 + $0x20] sm:$0xff]
        %v1017 = vld [vmem:[#allocation2 + $0x28] sm:$0xff]
        %v1018 = vld [vmem:[#allocation2 + $0x30] sm:$0xff]
        %v1019 = vld [vmem:[#allocation2 + $0x38] sm:$0xff]
        %v1020 = vld [vmem:[#allocation2 + $0x40] sm:$0xff]
        %v1021 = vld [vmem:[#allocation2 + $0x48] sm:$0xff]
        %v1022 = vld [vmem:[#allocation2 + $0x50] sm:$0xff]
        %v1023 = vld [vmem:[#allocation2 + $0x58] sm:$0xff]
        %v1024 = vld [vmem:[#allocation2 + $0x60] sm:$0xff]
        %v1025 = vld [vmem:[#allocation2 + $0x68] sm:$0xff]
        %v1026 = vld [vmem:[#allocation2 + $0x70] sm:$0xff]
        %v1027 = vld [vmem:[#allocation2 + $0x78] sm:$0xff]
        %v1028 = vld [vmem:[#allocation2 + $0x80] sm:$0xff]
        %v1029 = vld [vmem:[#allocation2 + $0x88] sm:$0xff]
        %v1030 = vld [vmem:[#allocation2 + $0x90] sm:$0xff]
        %v1031 = vld [vmem:[#allocation2 + $0x98] sm:$0xff]
        %v1032 = vld [vmem:[#allocation2 + $0xa0] sm:$0xff]
        %v1033 = vld [vmem:[#allocation2 + $0xa8] sm:$0xff]
        %v1034 = vld [vmem:[#allocation2 + $0xb0] sm:$0xff]
        %v1035 = vld [vmem:[#allocation2 + $0xb8] sm:$0xff]
        %v1036 = vld [vmem:[#allocation2 + $0xc0] sm:$0xff]
        %v1037 = vld [vmem:[#allocation2 + $0xc8] sm:$0xff]
        %v1038 = vld [vmem:[#allocation2 + $0xd0] sm:$0xff]
        %v1039 = vld [vmem:[#allocation2 + $0xd8] sm:$0xff]
        %v1040 = vld [vmem:[#allocation2 + $0xe0] sm:$0xff]
        %v1041 = vld [vmem:[#allocation2 + $0xe8] sm:$0xff]
        %v1042 = vld [vmem:[#allocation2 + $0xf0] sm:$0xff]
        %v1043 = vld [vmem:[#allocation2 + $0xf8] sm:$0xff]
        %v1044 = vld [vmem:[#allocation8] sm:$0xff]
        %v1045 = vld [vmem:[#allocation8 + $0x8] sm:$0xff]
        %v1046 = vld [vmem:[#allocation8 + $0x10] sm:$0xff]
        %v1047 = vld [vmem:[#allocation8 + $0x18] sm:$0xff]
        %v1048 = vld [vmem:[#allocation8 + $0x20] sm:$0xff]
        %v1049 = vld [vmem:[#allocation8 + $0x28] sm:$0xff]
        %v1050 = vld [vmem:[#allocation8 + $0x30] sm:$0xff]
        %v1051 = vld [vmem:[#allocation8 + $0x38] sm:$0xff]
        %v1052 = vld [vmem:[#allocation8 + $0x40] sm:$0xff]
        %v1053 = vld [vmem:[#allocation8 + $0x48] sm:$0xff]
        %v1054 = vld [vmem:[#allocation8 + $0x50] sm:$0xff]
        %v1055 = vld [vmem:[#allocation8 + $0x58] sm:$0xff]
        %v1056 = vld [vmem:[#allocation8 + $0x60] sm:$0xff]
        %v1057 = vld [vmem:[#allocation8 + $0x68] sm:$0xff]
        %v1058 = vld [vmem:[#allocation8 + $0x70] sm:$0xff]
        %v1059 = vld [vmem:[#allocation8 + $0x78] sm:$0xff]
        %v1060 = vld [vmem:[#allocation8 + $0x80] sm:$0xff]
        %v1061 = vld [vmem:[#allocation8 + $0x88] sm:$0xff]
        %v1062 = vld [vmem:[#allocation8 + $0x90] sm:$0xff]
        %v1063 = vld [vmem:[#allocation8 + $0x98] sm:$0xff]
        %v1064 = vld [vmem:[#allocation8 + $0xa0] sm:$0xff]
        %v1065 = vld [vmem:[#allocation8 + $0xa8] sm:$0xff]
        %v1066 = vld [vmem:[#allocation8 + $0xb0] sm:$0xff]
        %v1067 = vld [vmem:[#allocation8 + $0xb8] sm:$0xff]
        %v1068 = vld [vmem:[#allocation8 + $0xc0] sm:$0xff]
        %v1069 = vld [vmem:[#allocation8 + $0xc8] sm:$0xff]
        %v1070 = vld [vmem:[#allocation8 + $0xd0] sm:$0xff]
        %v1071 = vld [vmem:[#allocation8 + $0xd8] sm:$0xff]
        %v1072 = vld [vmem:[#allocation8 + $0xe0] sm:$0xff]
        %v1073 = vld [vmem:[#allocation8 + $0xe8] sm:$0xff]
        %v1074 = vld [vmem:[#allocation8 + $0xf0] sm:$0xff]
        %v1075 = vld [vmem:[#allocation8 + $0xf8] sm:$0xff]
        %1076 = vmatprep.subr.mxu0 0.0
        %1077 = vmatpush1.msra.mxu0 %v1059
        %1078 = vmatprep.subr.mxu0 0.0
        %1079 = vmatpush1.msra.mxu0 %v1058
        %1080 = vmatprep.subr.mxu0 0.0
        %1081 = vmatpush1.msra.mxu0 %v1057
        %1082 = vmatprep.subr.mxu0 0.0
        %1083 = vmatpush1.msra.mxu0 %v1056
        %1084 = vmatprep.subr.mxu0 0.0
        %1085 = vmatpush1.msra.mxu0 %v1055
        %1086 = vmatprep.subr.mxu0 0.0
        %1087 = vmatpush1.msra.mxu0 %v1054
        %1088 = vmatprep.subr.mxu0 0.0
        %1089 = vmatpush1.msra.mxu0 %v1053
        %1090 = vmatprep.subr.mxu0 0.0
        %1091 = vmatpush1.msra.mxu0 %v1052
        %1092 = vmatprep.subr.mxu0 0.0
        %1093 = vmatpush1.msra.mxu0 %v1051
        %1094 = vmatprep.subr.mxu0 0.0
        %1095 = vmatpush1.msra.mxu0 %v1050
        %1096 = vmatprep.subr.mxu0 0.0
        %1097 = vmatpush1.msra.mxu0 %v1049
        %1098 = vmatprep.subr.mxu0 0.0
        %1099 = vmatpush1.msra.mxu0 %v1048
        %1100 = vmatprep.subr.mxu0 0.0
        %1101 = vmatpush1.msra.mxu0 %v1047
        %1102 = vmatprep.subr.mxu0 0.0
        %1103 = vmatpush1.msra.mxu0 %v1046
        %1104 = vmatprep.subr.mxu0 0.0
        %1105 = vmatpush1.msra.mxu0 %v1045
        %1106 = vmatprep.subr.mxu0 0.0
        %1107 = vmatpush1.msra.mxu0 %v1044
        %1108 = vmatprep.subr.mxu0 0.0
        %1109 = vmatpush2.msra.mxu0 %v1075
        %1110 = vmatprep.subr.mxu0 0.0
        %1111 = vmatpush2.msra.mxu0 %v1074
        %1112 = vmatprep.subr.mxu0 0.0
        %1113 = vmatpush2.msra.mxu0 %v1073
        %1114 = vmatprep.subr.mxu0 0.0
        %1115 = vmatpush2.msra.mxu0 %v1072
        %1116 = vmatprep.subr.mxu0 0.0
        %1117 = vmatpush2.msra.mxu0 %v1071
        %1118 = vmatprep.subr.mxu0 0.0
        %1119 = vmatpush2.msra.mxu0 %v1070
        %1120 = vmatprep.subr.mxu0 0.0
        %1121 = vmatpush2.msra.mxu0 %v1069
        %1122 = vmatprep.subr.mxu0 0.0
        %1123 = vmatpush2.msra.mxu0 %v1068
        %1124 = vmatprep.subr.mxu0 0.0
        %1125 = vmatpush2.msra.mxu0 %v1067
        %1126 = vmatprep.subr.mxu0 0.0
        %1127 = vmatpush2.msra.mxu0 %v1066
        %1128 = vmatprep.subr.mxu0 0.0
        %1129 = vmatpush2.msra.mxu0 %v1065
        %1130 = vmatprep.subr.mxu0 0.0
        %1131 = vmatpush2.msra.mxu0 %v1064
        %1132 = vmatprep.subr.mxu0 0.0
        %1133 = vmatpush2.msra.mxu0 %v1063
        %1134 = vmatprep.subr.mxu0 0.0
        %1135 = vmatpush2.msra.mxu0 %v1062
        %1136 = vmatprep.subr.mxu0 0.0
        %1137 = vmatpush2.msra.mxu0 %v1061
        %1138 = vmatprep.subr.mxu0 0.0
        %1139 = vmatpush2.msra.mxu0 %v1060
        %1140 = vmatprep.mubr.f32.mxu0 %v949
        %1141 = vmatmul.mubr.f32.gmra.mxu0 %v948
        %v1142 = vpop.f32.mrf.mxu0
        %v1143 = vadd.f32 0.0, %v1142
        %v1144 = vpop.f32.mrf.mxu0
        %1145 = vmatprep.mubr.f32.mxu0 %v951
        %1146 = vmatmul.mubr.f32.gmra.mxu0 %v950
        %v1147 = vpop.f32.mrf.mxu0
        %v1148 = vadd.f32 0.0, %v1147
        %v1149 = vpop.f32.mrf.mxu0
        %1150 = vmatprep.mubr.f32.mxu0 %v953
        %1151 = vmatmul.mubr.f32.gmra.mxu0 %v952
        %v1152 = vpop.f32.mrf.mxu0
        %v1153 = vadd.f32 0.0, %v1152
        %v1154 = vpop.f32.mrf.mxu0
        %1155 = vmatprep.mubr.f32.mxu0 %v955
        %1156 = vmatmul.mubr.f32.gmra.mxu0 %v954
        %v1157 = vpop.f32.mrf.mxu0
        %v1158 = vadd.f32 0.0, %v1157
        %v1159 = vpop.f32.mrf.mxu0
        %1160 = vmatprep.mubr.f32.mxu0 %v957
        %1161 = vmatmul.mubr.f32.gmra.mxu0 %v956
        %v1162 = vpop.f32.mrf.mxu0
        %v1163 = vadd.f32 0.0, %v1162
        %v1164 = vpop.f32.mrf.mxu0
        %1165 = vmatprep.mubr.f32.mxu0 %v959
        %1166 = vmatmul.mubr.f32.gmra.mxu0 %v958
        %v1167 = vpop.f32.mrf.mxu0
        %v1168 = vadd.f32 0.0, %v1167
        %v1169 = vpop.f32.mrf.mxu0
        %1170 = vmatprep.mubr.f32.mxu0 %v961
        %1171 = vmatmul.mubr.f32.gmra.mxu0 %v960
        %v1172 = vpop.f32.mrf.mxu0
        %v1173 = vadd.f32 0.0, %v1172
        %v1174 = vpop.f32.mrf.mxu0
        %1175 = vmatprep.mubr.f32.mxu0 %v963
        %1176 = vmatmul.mubr.f32.gmra.mxu0 %v962
        %v1177 = vpop.f32.mrf.mxu0
        %v1178 = vadd.f32 0.0, %v1177
        %v1179 = vpop.f32.mrf.mxu0
        %1180 = vmatprep.mubr.f32.mxu0 %v965
        %1181 = vmatmul.mubr.f32.gmra.mxu0 %v964
        %v1182 = vpop.f32.mrf.mxu0
        %v1183 = vadd.f32 0.0, %v1182
        %v1184 = vpop.f32.mrf.mxu0
        %1185 = vmatprep.mubr.f32.mxu0 %v967
        %1186 = vmatmul.mubr.f32.gmra.mxu0 %v966
        %v1187 = vpop.f32.mrf.mxu0
        %v1188 = vadd.f32 0.0, %v1187
        %v1189 = vpop.f32.mrf.mxu0
        %1190 = vmatprep.mubr.f32.mxu0 %v969
        %1191 = vmatmul.mubr.f32.gmra.mxu0 %v968
        %v1192 = vpop.f32.mrf.mxu0
        %v1193 = vadd.f32 0.0, %v1192
        %v1194 = vpop.f32.mrf.mxu0
        %1195 = vmatprep.mubr.f32.mxu0 %v971
        %1196 = vmatmul.mubr.f32.gmra.mxu0 %v970
        %v1197 = vpop.f32.mrf.mxu0
        %v1198 = vadd.f32 0.0, %v1197
        %v1199 = vpop.f32.mrf.mxu0
        %1200 = vmatprep.mubr.f32.mxu0 %v973
        %1201 = vmatmul.mubr.f32.gmra.mxu0 %v972
        %v1202 = vpop.f32.mrf.mxu0
        %v1203 = vadd.f32 0.0, %v1202
        %v1204 = vpop.f32.mrf.mxu0
        %1205 = vmatprep.mubr.f32.mxu0 %v975
        %1206 = vmatmul.mubr.f32.gmra.mxu0 %v974
        %v1207 = vpop.f32.mrf.mxu0
        %v1208 = vadd.f32 0.0, %v1207
        %v1209 = vpop.f32.mrf.mxu0
        %1210 = vmatprep.mubr.f32.mxu0 %v977
        %1211 = vmatmul.mubr.f32.gmra.mxu0 %v976
        %v1212 = vpop.f32.mrf.mxu0
        %v1213 = vadd.f32 0.0, %v1212
        %v1214 = vpop.f32.mrf.mxu0
        %1215 = vmatprep.mubr.f32.mxu0 %v979
        %1216 = vmatmul.mubr.f32.gmra.mxu0 %v978
        %v1217 = vpop.f32.mrf.mxu0
        %v1218 = vadd.f32 0.0, %v1217
        %v1219 = vpop.f32.mrf.mxu0
        %1220 = vmatprep.mubr.f32.mxu0 %v981
        %1221 = vmatmul.mubr.f32.gmra.mxu0 %v980
        %v1222 = vpop.f32.mrf.mxu0
        %v1223 = vadd.f32 0.0, %v1222
        %v1224 = vpop.f32.mrf.mxu0
        %1225 = vmatprep.mubr.f32.mxu0 %v983
        %1226 = vmatmul.mubr.f32.gmra.mxu0 %v982
        %v1227 = vpop.f32.mrf.mxu0
        %v1228 = vadd.f32 0.0, %v1227
        %v1229 = vpop.f32.mrf.mxu0
        %1230 = vmatprep.mubr.f32.mxu0 %v985
        %1231 = vmatmul.mubr.f32.gmra.mxu0 %v984
        %v1232 = vpop.f32.mrf.mxu0
        %v1233 = vadd.f32 0.0, %v1232
        %v1234 = vpop.f32.mrf.mxu0
        %1235 = vmatprep.mubr.f32.mxu0 %v987
        %1236 = vmatmul.mubr.f32.gmra.mxu0 %v986
        %v1237 = vpop.f32.mrf.mxu0
        %v1238 = vadd.f32 0.0, %v1237
        %v1239 = vpop.f32.mrf.mxu0
        %1240 = vmatprep.mubr.f32.mxu0 %v989
        %1241 = vmatmul.mubr.f32.gmra.mxu0 %v988
        %v1242 = vpop.f32.mrf.mxu0
        %v1243 = vadd.f32 0.0, %v1242
        %v1244 = vpop.f32.mrf.mxu0
        %1245 = vmatprep.mubr.f32.mxu0 %v991
        %1246 = vmatmul.mubr.f32.gmra.mxu0 %v990
        %v1247 = vpop.f32.mrf.mxu0
        %v1248 = vadd.f32 0.0, %v1247
        %v1249 = vpop.f32.mrf.mxu0
        %1250 = vmatprep.mubr.f32.mxu0 %v993
        %1251 = vmatmul.mubr.f32.gmra.mxu0 %v992
        %v1252 = vpop.f32.mrf.mxu0
        %v1253 = vadd.f32 0.0, %v1252
        %v1254 = vpop.f32.mrf.mxu0
        %1255 = vmatprep.mubr.f32.mxu0 %v995
        %1256 = vmatmul.mubr.f32.gmra.mxu0 %v994
        %v1257 = vpop.f32.mrf.mxu0
        %v1258 = vadd.f32 0.0, %v1257
        %v1259 = vpop.f32.mrf.mxu0
        %1260 = vmatprep.mubr.f32.mxu0 %v997
        %1261 = vmatmul.mubr.f32.gmra.mxu0 %v996
        %v1262 = vpop.f32.mrf.mxu0
        %v1263 = vadd.f32 0.0, %v1262
        %v1264 = vpop.f32.mrf.mxu0
        %1265 = vmatprep.mubr.f32.mxu0 %v999
        %1266 = vmatmul.mubr.f32.gmra.mxu0 %v998
        %v1267 = vpop.f32.mrf.mxu0
        %v1268 = vadd.f32 0.0, %v1267
        %v1269 = vpop.f32.mrf.mxu0
        %1270 = vmatprep.mubr.f32.mxu0 %v1001
        %1271 = vmatmul.mubr.f32.gmra.mxu0 %v1000
        %v1272 = vpop.f32.mrf.mxu0
        %v1273 = vadd.f32 0.0, %v1272
        %v1274 = vpop.f32.mrf.mxu0
        %1275 = vmatprep.mubr.f32.mxu0 %v1003
        %1276 = vmatmul.mubr.f32.gmra.mxu0 %v1002
        %v1277 = vpop.f32.mrf.mxu0
        %v1278 = vadd.f32 0.0, %v1277
        %v1279 = vpop.f32.mrf.mxu0
        %1280 = vmatprep.mubr.f32.mxu0 %v1005
        %1281 = vmatmul.mubr.f32.gmra.mxu0 %v1004
        %v1282 = vpop.f32.mrf.mxu0
        %v1283 = vadd.f32 0.0, %v1282
        %v1284 = vpop.f32.mrf.mxu0
        %1285 = vmatprep.mubr.f32.mxu0 %v1007
        %1286 = vmatmul.mubr.f32.gmra.mxu0 %v1006
        %v1287 = vpop.f32.mrf.mxu0
        %v1288 = vadd.f32 0.0, %v1287
        %v1289 = vpop.f32.mrf.mxu0
        %1290 = vmatprep.mubr.f32.mxu0 %v1009
        %1291 = vmatmul.mubr.f32.gmra.mxu0 %v1008
        %v1292 = vpop.f32.mrf.mxu0
        %v1293 = vadd.f32 0.0, %v1292
        %v1294 = vpop.f32.mrf.mxu0
        %1295 = vmatprep.mubr.f32.mxu0 %v1011
        %1296 = vmatmul.mubr.f32.gmra.mxu0 %v1010
        %v1297 = vpop.f32.mrf.mxu0
        %v1298 = vadd.f32 0.0, %v1297
        %v1299 = vpop.f32.mrf.mxu0
        %1300 = vdwg.mxu0
        %v1301 = vadd.f32 %v1012, %v1143
        %v1302 = vadd.f32 %v1013, %v1148
        %v1303 = vadd.f32 %v1014, %v1153
        %v1304 = vadd.f32 %v1015, %v1158
        %v1305 = vadd.f32 %v1016, %v1163
        %v1306 = vadd.f32 %v1017, %v1168
        %v1307 = vadd.f32 %v1018, %v1173
        %v1308 = vadd.f32 %v1019, %v1178
        %v1309 = vadd.f32 %v1020, %v1183
        %v1310 = vadd.f32 %v1021, %v1188
        %v1311 = vadd.f32 %v1022, %v1193
        %v1312 = vadd.f32 %v1023, %v1198
        %v1313 = vadd.f32 %v1024, %v1203
        %v1314 = vadd.f32 %v1025, %v1208
        %v1315 = vadd.f32 %v1026, %v1213
        %v1316 = vadd.f32 %v1027, %v1218
        %v1317 = vadd.f32 %v1028, %v1223
        %v1318 = vadd.f32 %v1029, %v1228
        %v1319 = vadd.f32 %v1030, %v1233
        %v1320 = vadd.f32 %v1031, %v1238
        %v1321 = vadd.f32 %v1032, %v1243
        %v1322 = vadd.f32 %v1033, %v1248
        %v1323 = vadd.f32 %v1034, %v1253
        %v1324 = vadd.f32 %v1035, %v1258
        %v1325 = vadd.f32 %v1036, %v1263
        %v1326 = vadd.f32 %v1037, %v1268
        %v1327 = vadd.f32 %v1038, %v1273
        %v1328 = vadd.f32 %v1039, %v1278
        %v1329 = vadd.f32 %v1040, %v1283
        %v1330 = vadd.f32 %v1041, %v1288
        %v1331 = vadd.f32 %v1042, %v1293
        %v1332 = vadd.f32 %v1043, %v1298
        %1333 = vst [vmem:[#allocation2] sm:$0xff] %v1301
        %1334 = vst [vmem:[#allocation2 + $0x8] sm:$0xff] %v1302
        %1335 = vst [vmem:[#allocation2 + $0x10] sm:$0xff] %v1303
        %1336 = vst [vmem:[#allocation2 + $0x18] sm:$0xff] %v1304
        %1337 = vst [vmem:[#allocation2 + $0x20] sm:$0xff] %v1305
        %1338 = vst [vmem:[#allocation2 + $0x28] sm:$0xff] %v1306
        %1339 = vst [vmem:[#allocation2 + $0x30] sm:$0xff] %v1307
        %1340 = vst [vmem:[#allocation2 + $0x38] sm:$0xff] %v1308
        %1341 = vst [vmem:[#allocation2 + $0x40] sm:$0xff] %v1309
        %1342 = vst [vmem:[#allocation2 + $0x48] sm:$0xff] %v1310
        %1343 = vst [vmem:[#allocation2 + $0x50] sm:$0xff] %v1311
        %1344 = vst [vmem:[#allocation2 + $0x58] sm:$0xff] %v1312
        %1345 = vst [vmem:[#allocation2 + $0x60] sm:$0xff] %v1313
        %1346 = vst [vmem:[#allocation2 + $0x68] sm:$0xff] %v1314
        %1347 = vst [vmem:[#allocation2 + $0x70] sm:$0xff] %v1315
        %1348 = vst [vmem:[#allocation2 + $0x78] sm:$0xff] %v1316
        %1349 = vst [vmem:[#allocation2 + $0x80] sm:$0xff] %v1317
        %1350 = vst [vmem:[#allocation2 + $0x88] sm:$0xff] %v1318
        %1351 = vst [vmem:[#allocation2 + $0x90] sm:$0xff] %v1319
        %1352 = vst [vmem:[#allocation2 + $0x98] sm:$0xff] %v1320
        %1353 = vst [vmem:[#allocation2 + $0xa0] sm:$0xff] %v1321
        %1354 = vst [vmem:[#allocation2 + $0xa8] sm:$0xff] %v1322
        %1355 = vst [vmem:[#allocation2 + $0xb0] sm:$0xff] %v1323
        %1356 = vst [vmem:[#allocation2 + $0xb8] sm:$0xff] %v1324
        %1357 = vst [vmem:[#allocation2 + $0xc0] sm:$0xff] %v1325
        %1358 = vst [vmem:[#allocation2 + $0xc8] sm:$0xff] %v1326
        %1359 = vst [vmem:[#allocation2 + $0xd0] sm:$0xff] %v1327
        %1360 = vst [vmem:[#allocation2 + $0xd8] sm:$0xff] %v1328
        %1361 = vst [vmem:[#allocation2 + $0xe0] sm:$0xff] %v1329
        %1362 = vst [vmem:[#allocation2 + $0xe8] sm:$0xff] %v1330
        %1363 = vst [vmem:[#allocation2 + $0xf0] sm:$0xff] %v1331
        %1364 = vst [vmem:[#allocation2 + $0xf8] sm:$0xff] %v1332
        // Predicated region
        $region57: #{tpu_custom_call.1} parent=39 // pred_check
          %p1365 = pneg %p323
        $region58: #{tpu_custom_call.1} parent=39 // pred_check_branch
          %1367 = sbr.rel (%p1365) target = $region60
        $region59: #{tpu_custom_call.1} parent=39 // pred_region
          %v1368 = vld [vmem:[#allocation2] sm:$0xff]
          %v1369 = vld [vmem:[#allocation2 + $0x8] sm:$0xff]
          %v1370 = vld [vmem:[#allocation2 + $0x10] sm:$0xff]
          %v1371 = vld [vmem:[#allocation2 + $0x18] sm:$0xff]
          %v1372 = vld [vmem:[#allocation2 + $0x20] sm:$0xff]
          %v1373 = vld [vmem:[#allocation2 + $0x28] sm:$0xff]
          %v1374 = vld [vmem:[#allocation2 + $0x30] sm:$0xff]
          %v1375 = vld [vmem:[#allocation2 + $0x38] sm:$0xff]
          %v1376 = vld [vmem:[#allocation2 + $0x40] sm:$0xff]
          %v1377 = vld [vmem:[#allocation2 + $0x48] sm:$0xff]
          %v1378 = vld [vmem:[#allocation2 + $0x50] sm:$0xff]
          %v1379 = vld [vmem:[#allocation2 + $0x58] sm:$0xff]
          %v1380 = vld [vmem:[#allocation2 + $0x60] sm:$0xff]
          %v1381 = vld [vmem:[#allocation2 + $0x68] sm:$0xff]
          %v1382 = vld [vmem:[#allocation2 + $0x70] sm:$0xff]
          %v1383 = vld [vmem:[#allocation2 + $0x78] sm:$0xff]
          %v1384 = vld [vmem:[#allocation2 + $0x80] sm:$0xff]
          %v1385 = vld [vmem:[#allocation2 + $0x88] sm:$0xff]
          %v1386 = vld [vmem:[#allocation2 + $0x90] sm:$0xff]
          %v1387 = vld [vmem:[#allocation2 + $0x98] sm:$0xff]
          %v1388 = vld [vmem:[#allocation2 + $0xa0] sm:$0xff]
          %v1389 = vld [vmem:[#allocation2 + $0xa8] sm:$0xff]
          %v1390 = vld [vmem:[#allocation2 + $0xb0] sm:$0xff]
          %v1391 = vld [vmem:[#allocation2 + $0xb8] sm:$0xff]
          %v1392 = vld [vmem:[#allocation2 + $0xc0] sm:$0xff]
          %v1393 = vld [vmem:[#allocation2 + $0xc8] sm:$0xff]
          %v1394 = vld [vmem:[#allocation2 + $0xd0] sm:$0xff]
          %v1395 = vld [vmem:[#allocation2 + $0xd8] sm:$0xff]
          %v1396 = vld [vmem:[#allocation2 + $0xe0] sm:$0xff]
          %v1397 = vld [vmem:[#allocation2 + $0xe8] sm:$0xff]
          %v1398 = vld [vmem:[#allocation2 + $0xf0] sm:$0xff]
          %v1399 = vld [vmem:[#allocation2 + $0xf8] sm:$0xff]
          %v1400 = vld [vmem:[%s4] sm:$0x1]
          %v1402 = vlaneseq
          %v1403 = vshrl.u32 %v1402, 7
          %v1404 = vsub.s32 0, %v1403
          %v1405 = vrot.slane %v1400, %v1404
          %v1407 = vadd.f32 %v1368, %v1405
          %v1408 = vadd.f32 %v1369, %v1405
          %v1409 = vadd.f32 %v1370, %v1405
          %v1410 = vadd.f32 %v1371, %v1405
          %v1411 = vadd.f32 %v1372, %v1405
          %v1412 = vadd.f32 %v1373, %v1405
          %v1413 = vadd.f32 %v1374, %v1405
          %v1414 = vadd.f32 %v1375, %v1405
          %v1415 = vadd.f32 %v1376, %v1405
          %v1416 = vadd.f32 %v1377, %v1405
          %v1417 = vadd.f32 %v1378, %v1405
          %v1418 = vadd.f32 %v1379, %v1405
          %v1419 = vadd.f32 %v1380, %v1405
          %v1420 = vadd.f32 %v1381, %v1405
          %v1421 = vadd.f32 %v1382, %v1405
          %v1422 = vadd.f32 %v1383, %v1405
          %v1423 = vadd.f32 %v1384, %v1405
          %v1424 = vadd.f32 %v1385, %v1405
          %v1425 = vadd.f32 %v1386, %v1405
          %v1426 = vadd.f32 %v1387, %v1405
          %v1427 = vadd.f32 %v1388, %v1405
          %v1428 = vadd.f32 %v1389, %v1405
          %v1429 = vadd.f32 %v1390, %v1405
          %v1430 = vadd.f32 %v1391, %v1405
          %v1431 = vadd.f32 %v1392, %v1405
          %v1432 = vadd.f32 %v1393, %v1405
          %v1433 = vadd.f32 %v1394, %v1405
          %v1434 = vadd.f32 %v1395, %v1405
          %v1435 = vadd.f32 %v1396, %v1405
          %v1436 = vadd.f32 %v1397, %v1405
          %v1437 = vadd.f32 %v1398, %v1405
          %v1438 = vadd.f32 %v1399, %v1405
          %1439 = vst [vmem:[%s313] sm:$0xff] %v1407
          %1440 = vst [vmem:[%s313 + $0x8] sm:$0xff] %v1408
          %1441 = vst [vmem:[%s313 + $0x10] sm:$0xff] %v1409
          %1442 = vst [vmem:[%s313 + $0x18] sm:$0xff] %v1410
          %1443 = vst [vmem:[%s313 + $0x20] sm:$0xff] %v1411
          %1444 = vst [vmem:[%s313 + $0x28] sm:$0xff] %v1412
          %1445 = vst [vmem:[%s313 + $0x30] sm:$0xff] %v1413
          %1446 = vst [vmem:[%s313 + $0x38] sm:$0xff] %v1414
          %1447 = vst [vmem:[%s313 + $0x40] sm:$0xff] %v1415
          %1448 = vst [vmem:[%s313 + $0x48] sm:$0xff] %v1416
          %1449 = vst [vmem:[%s313 + $0x50] sm:$0xff] %v1417
          %1450 = vst [vmem:[%s313 + $0x58] sm:$0xff] %v1418
          %1451 = vst [vmem:[%s313 + $0x60] sm:$0xff] %v1419
          %1452 = vst [vmem:[%s313 + $0x68] sm:$0xff] %v1420
          %1453 = vst [vmem:[%s313 + $0x70] sm:$0xff] %v1421
          %1454 = vst [vmem:[%s313 + $0x78] sm:$0xff] %v1422
          %1455 = vst [vmem:[%s313 + $0x80] sm:$0xff] %v1423
          %1456 = vst [vmem:[%s313 + $0x88] sm:$0xff] %v1424
          %1457 = vst [vmem:[%s313 + $0x90] sm:$0xff] %v1425
          %1458 = vst [vmem:[%s313 + $0x98] sm:$0xff] %v1426
          %1459 = vst [vmem:[%s313 + $0xa0] sm:$0xff] %v1427
          %1460 = vst [vmem:[%s313 + $0xa8] sm:$0xff] %v1428
          %1461 = vst [vmem:[%s313 + $0xb0] sm:$0xff] %v1429
          %1462 = vst [vmem:[%s313 + $0xb8] sm:$0xff] %v1430
          %1463 = vst [vmem:[%s313 + $0xc0] sm:$0xff] %v1431
          %1464 = vst [vmem:[%s313 + $0xc8] sm:$0xff] %v1432
          %1465 = vst [vmem:[%s313 + $0xd0] sm:$0xff] %v1433
          %1466 = vst [vmem:[%s313 + $0xd8] sm:$0xff] %v1434
          %1467 = vst [vmem:[%s313 + $0xe0] sm:$0xff] %v1435
          %1468 = vst [vmem:[%s313 + $0xe8] sm:$0xff] %v1436
          %1469 = vst [vmem:[%s313 + $0xf0] sm:$0xff] %v1437
          %1470 = vst [vmem:[%s313 + $0xf8] sm:$0xff] %v1438
        $region60: #{tpu_custom_call.1} parent=39 // pred_fallthru
          _
        %s1471 = sand.u32 %s168, 1
        %s1472 = scalar_lea.sflag [#allocation5], %s1471
        %s1473 = sand.u32 %s168, 1
        %s1474 = smul.addr %s1473, 256
        %s1475 = scalar_lea.vmem [#allocation9], %s1474
        // Predicated region
        $region61: #{tpu_custom_call.1} parent=39 // pred_check
          %p1476 = pneg %p178
        $region62: #{tpu_custom_call.1} parent=39 // pred_check_branch
          %1478 = sbr.rel (%p1476) target = $region64
        $region63: #{tpu_custom_call.1} parent=39 // pred_region
          %s1479 = smul.u32 32, %s27
          %s1481 = ssub.s32 4096, 4096
          %1482 = vsyncadd %s1472, %s1481
          %s1483 = smul.addr %s1479, 128
          %s1484 = scalar_lea.hbm %s5, %s1483
          %s1485 = sshll.u32 %s1475, 4
          %s1486 = int_to_ptr.vmem [resolvable:$true] %s1485
          %1491 = dma.vmem_to_hbm [thread:$0]  %s1486, 4096, %s1484, %s1472, 128, 128, 8
        $region64: #{tpu_custom_call.1} parent=39 // pred_fallthru
          _
      $region40: #{tpu_custom_call.1} parent=5 // pred_fallthru
        _
      %p1492 = scmp.le.s32.totalorder 2, %s18
      // Predicated region
      $region65: #{tpu_custom_call.1} parent=5 // pred_check
        %p1493 = pneg %p1492
      $region66: #{tpu_custom_call.1} parent=5 // pred_check_branch
        %1495 = sbr.rel (%p1493) target = $region68
      $region67: #{tpu_custom_call.1} parent=5 // pred_region
        %s1496 = ssub.s32 %s18, 2
        // Predicated region
        $region69: #{tpu_custom_call.1} parent=67 // pred_check
          %p1497 = pneg %p184
        $region70: #{tpu_custom_call.1} parent=67 // pred_check_branch
          %1499 = sbr.rel (%p1497) target = $region72
        $region71: #{tpu_custom_call.1} parent=67 // pred_region
          %s1500 = sand.u32 %s169, 1
          %s1501 = scalar_lea.sflag [#allocation5], %s1500
          %s1502 = sand.u32 %s169, 1
          %s1503 = smul.addr %s1502, 256
          %s1504 = scalar_lea.vmem [#allocation9], %s1503
          %1505 = dma.done %s1501, 4096
        $region72: #{tpu_custom_call.1} parent=67 // pred_fallthru
          _
      $region68: #{tpu_custom_call.1} parent=5 // pred_fallthru
        _
    $region6: #{tpu_custom_call.1} parent=1 // loop_footer
      %s22 = sadd.s32 1, %s18
    $region7: #{tpu_custom_call.1} parent=1 // loop_footer_branch
      %17 = sbr.rel target = $region3
    $region8: #{tpu_custom_call.1} parent=1 // loop_exit
      _
    %1506 = vsyncpa [#allocation4], 1
    %s1507 = scalar_lea.sflag [#allocation4], 1
    %1508 = vsyncpa %s1507, 1
    %1509 = vsyncpa [#allocation7], 1
    %1510 = vsyncpa [#allocation5], 1
    %s1511 = scalar_lea.sflag [#allocation5], 1
    %1512 = vsyncpa %s1511, 1

</llo_original>
